<compile_context>
chip_gen: v5e
topology: v5e:2x2
jax: 0.10.0
libtpu: 0.0.40
codegen_flags: <defaults>
</compile_context>

<pallas_src>
import jax
import jax.numpy as jnp
from jax import lax
from jax.experimental import pallas as pl
from jax.experimental.pallas import tpu as pltpu


def _lstm2_kernel(x_ref, wih0_ref, whh0_ref, b0_ref,
                  wih1_ref, whh1_ref, b1_ref,
                  out_ref, h_seq, gates_seq):
    S, B, H = x_ref.shape

    def run_layer(in_seq_ref, write_ref, wih_ref, whh_ref, b_ref):
        # ---- hoisted input projection: one big MXU matmul for all timesteps ----
        x_all = in_seq_ref[...].astype(jnp.float32).reshape(S * B, H)     # (S*B, H)
        gx = jnp.dot(x_all, wih_ref[...],
                     preferred_element_type=jnp.float32) + b_ref[...]      # (S*B, 4H)
        gates_seq[...] = gx.reshape(S, B, 4 * H)

        whh = whh_ref[...]                                                 # (H, 4H)

        # ---- serial recurrence: per step only h @ W_hh + precomputed gates ----
        def step(t, carry):
            h, c = carry
            gates = gates_seq[t] + jnp.dot(h, whh,
                                           preferred_element_type=jnp.float32)  # (B, 4H)
            sig = jax.nn.sigmoid(gates)          # single EUP pass over 4H lanes
            i = sig[:, 0 * H:1 * H]
            f = sig[:, 1 * H:2 * H]
            o = sig[:, 3 * H:4 * H]
            g = jnp.tanh(gates[:, 2 * H:3 * H])
            c_new = f * c + i * g
            h_new = o * jnp.tanh(c_new)
            write_ref[t] = h_new.astype(write_ref.dtype)
            return h_new, c_new

        h0 = jnp.zeros((B, H), jnp.float32)
        c0 = jnp.zeros((B, H), jnp.float32)
        lax.fori_loop(0, S, step, (h0, c0), unroll=True)

    # layer 0: input sequence -> hidden-sequence scratch
    run_layer(x_ref, h_seq, wih0_ref, whh0_ref, b0_ref)
    # TODO(synk): nn.LSTM inter-layer dropout (p=0.1) only applies in train mode;
    # eval-mode semantics are implemented here (no dropout).
    # layer 1: hidden-sequence scratch -> output sequence
    run_layer(h_seq, out_ref, wih1_ref, whh1_ref, b1_ref)


def lstm_encoder(x, params):
    """x: (B, S, H) float32, batch_first like PyTorch. Returns (B, S, H)."""
    B, S, H = x.shape
    x_tm = jnp.transpose(x, (1, 0, 2))  # time-major (S, B, H)

    vmem = pl.BlockSpec(memory_space=pltpu.MemorySpace.VMEM)
    out_tm = pl.pallas_call(
        _lstm2_kernel,
        out_shape=jax.ShapeDtypeStruct((S, B, H), x.dtype),
        in_specs=[vmem] * 7,
        out_specs=vmem,
        scratch_shapes=[
            pltpu.VMEM((S, B, H), jnp.float32),       # layer-0 hidden sequence
            pltpu.VMEM((S, B, 4 * H), jnp.float32),   # precomputed gate pre-activations
        ],
    )(x_tm,
      params["wih0"], params["whh0"], params["b0"],
      params["wih1"], params["whh1"], params["b1"])

    return jnp.transpose(out_tm, (1, 0, 2))


def init_params(key, H):
    """Deterministic init matching the module's shapes.

    PyTorch LSTM per layer: weight_ih (4H, in), weight_hh (4H, H),
    bias_ih (4H,), bias_hh (4H,). Matrices get xavier_uniform_, biases keep
    PyTorch's default U(-1/sqrt(H), 1/sqrt(H)).
    Weights are pre-transposed to (in, 4H) and the two biases summed; this is
    parameter "glue" only and does not change forward semantics.
    """
    ks = jax.random.split(key, 8)

    def xavier(k, fan_out, fan_in):
        bound = (6.0 / (fan_in + fan_out)) ** 0.5
        return jax.random.uniform(k, (fan_out, fan_in), jnp.float32, -bound, bound)

    def bias(k):
        bound = 1.0 / (H ** 0.5)
        return jax.random.uniform(k, (4 * H,), jnp.float32, -bound, bound)

    p = {}
    for layer, base in ((0, 0), (1, 4)):
        w_ih = xavier(ks[base + 0], 4 * H, H)       # (4H, H)
        w_hh = xavier(ks[base + 1], 4 * H, H)       # (4H, H)
        b_ih = bias(ks[base + 2])
        b_hh = bias(ks[base + 3])
        p[f"wih{layer}"] = jnp.transpose(w_ih)                    # (H, 4H)
        p[f"whh{layer}"] = jnp.transpose(w_hh)                    # (H, 4H)
        p[f"b{layer}"] = (b_ih + b_hh).reshape(1, 4 * H)          # (1, 4H)
    return p


def _reference_lstm(x, params):
    """Pure-JAX reference (same math) for a correctness check."""
    B, S, H = x.shape
    seq = x
    for layer in range(2):
        wih, whh, b = params[f"wih{layer}"], params[f"whh{layer}"], params[f"b{layer}"]
        h = jnp.zeros((B, H), jnp.float32)
        c = jnp.zeros((B, H), jnp.float32)
        outs = []
        for t in range(S):
            gates = seq[:, t, :] @ wih + h @ whh + b
            i = jax.nn.sigmoid(gates[:, :H])
            f = jax.nn.sigmoid(gates[:, H:2 * H])
            g = jnp.tanh(gates[:, 2 * H:3 * H])
            o = jax.nn.sigmoid(gates[:, 3 * H:])
            c = f * c + i * g
            h = o * jnp.tanh(c)
            outs.append(h)
        seq = jnp.stack(outs, axis=1)
    return seq


if __name__ == "__main__":
    key = jax.random.PRNGKey(0)
    B, S, H = 2, 8, 32          # config.Embedding.base_dim = 32
    k_x, k_p = jax.random.split(key)
    x = jax.random.normal(k_x, (B, S, H), jnp.float32)
    params = init_params(k_p, H)

    out = jax.block_until_ready(lstm_encoder(x, params))
    ref = _reference_lstm(x, params)
    assert out.shape == (B, S, H)
    assert jnp.allclose(out, ref, atol=1e-5, rtol=1e-5)
    print("KERNEL_OK")
</pallas_src>

<mosaic_0001>
module attributes {stable_mosaic.version = 11 : i64} {
  func.func @_lstm2_kernel(%arg0: memref<8x2x32xf32, #tpu.memory_space<vmem>>, %arg1: memref<32x128xf32, #tpu.memory_space<vmem>>, %arg2: memref<32x128xf32, #tpu.memory_space<vmem>>, %arg3: memref<1x128xf32, #tpu.memory_space<vmem>>, %arg4: memref<32x128xf32, #tpu.memory_space<vmem>>, %arg5: memref<32x128xf32, #tpu.memory_space<vmem>>, %arg6: memref<1x128xf32, #tpu.memory_space<vmem>>, %arg7: memref<8x2x32xf32, #tpu.memory_space<vmem>>, %arg8: memref<8x2x32xf32, #tpu.memory_space<vmem>>, %arg9: memref<8x2x128xf32, #tpu.memory_space<vmem>>) attributes {dimension_semantics = [], scalar_prefetch = 0 : i64, scratch_operands = 2 : i64, tpu.core_type = #tpu.core_type<tc>} {
    %c0 = arith.constant 0 : index
    %c0_0 = arith.constant 0 : index
    %c0_1 = arith.constant 0 : index
    %0 = vector.load %arg0[%c0, %c0_0, %c0_1] : memref<8x2x32xf32, #tpu.memory_space<vmem>>, vector<8x2x32xf32>
    %1 = vector.shape_cast %0 : vector<8x2x32xf32> to vector<16x32xf32>
    %c0_2 = arith.constant 0 : index
    %c0_3 = arith.constant 0 : index
    %2 = vector.load %arg1[%c0_2, %c0_3] : memref<32x128xf32, #tpu.memory_space<vmem>>, vector<32x128xf32>
    %cst = arith.constant dense<0.000000e+00> : vector<16x128xf32>
    %3 = tpu.matmul %1, %2, %cst {dimension_numbers = #tpu.dot_dimension_numbers<[1], [0], [0], [1], [0, 0, 1, 1], [], []>} : vector<16x32xf32>, vector<32x128xf32>, vector<16x128xf32> -> vector<16x128xf32>
    %c0_4 = arith.constant 0 : index
    %c0_5 = arith.constant 0 : index
    %4 = vector.load %arg3[%c0_4, %c0_5] : memref<1x128xf32, #tpu.memory_space<vmem>>, vector<1x128xf32>
    %5 = vector.broadcast %4 : vector<1x128xf32> to vector<16x128xf32>
    %6 = arith.addf %3, %5 : vector<16x128xf32>
    %7 = vector.shape_cast %6 : vector<16x128xf32> to vector<8x2x128xf32>
    %c0_6 = arith.constant 0 : index
    %c0_7 = arith.constant 0 : index
    %c0_8 = arith.constant 0 : index
    %8 = vector.load %arg9[%c0_6, %c0_7, %c0_8] : memref<8x2x128xf32, #tpu.memory_space<vmem>>, vector<8x2x128xf32>
    tpu.vector_store %arg9[%c0_6, %c0_7, %c0_8], %7 {strides = array<i32>} : memref<8x2x128xf32, #tpu.memory_space<vmem>>, vector<8x2x128xf32>,
    %c0_9 = arith.constant 0 : index
    %c0_10 = arith.constant 0 : index
    %9 = vector.load %arg2[%c0_9, %c0_10] : memref<32x128xf32, #tpu.memory_space<vmem>>, vector<32x128xf32>
    %cst_11 = arith.constant 0.000000e+00 : f32
    %10 = vector.broadcast %cst_11 : f32 to vector<2x32xf32>
    %cst_12 = arith.constant 0.000000e+00 : f32
    %11 = vector.broadcast %cst_12 : f32 to vector<2x32xf32>
    %c0_i32 = arith.constant 0 : i32
    %12 = arith.index_cast %c0_i32 : i32 to index
    %c0_13 = arith.constant 0 : index
    %c0_14 = arith.constant 0 : index
    %13 = vector.load %arg9[%12, %c0_13, %c0_14] : memref<8x2x128xf32, #tpu.memory_space<vmem>>, vector<1x2x128xf32>
    %14 = vector.shape_cast %13 : vector<1x2x128xf32> to vector<2x128xf32>
    %cst_15 = arith.constant dense<0.000000e+00> : vector<2x128xf32>
    %15 = tpu.matmul %10, %9, %cst_15 {dimension_numbers = #tpu.dot_dimension_numbers<[1], [0], [0], [1], [0, 0, 1, 1], [], []>} : vector<2x32xf32>, vector<32x128xf32>, vector<2x128xf32> -> vector<2x128xf32>
    %16 = arith.addf %14, %15 : vector<2x128xf32>
    %17 = arith.negf %16 : vector<2x128xf32>
    %18 = math.exp %17 : vector<2x128xf32>
    %cst_16 = arith.constant 1.000000e+00 : f32
    %19 = vector.broadcast %cst_16 : f32 to vector<2x128xf32>
    %20 = arith.addf %19, %18 : vector<2x128xf32>
    %21 = arith.divf %19, %20 : vector<2x128xf32>
    %22 = vector.extract_strided_slice %21 {offsets = [0, 0], sizes = [2, 32], strides = [1, 1]} : vector<2x128xf32> to vector<2x32xf32>
    %23 = vector.extract_strided_slice %21 {offsets = [0, 32], sizes = [2, 32], strides = [1, 1]} : vector<2x128xf32> to vector<2x32xf32>
    %24 = vector.extract_strided_slice %21 {offsets = [0, 96], sizes = [2, 32], strides = [1, 1]} : vector<2x128xf32> to vector<2x32xf32>
    %25 = vector.extract_strided_slice %16 {offsets = [0, 64], sizes = [2, 32], strides = [1, 1]} : vector<2x128xf32> to vector<2x32xf32>
    %26 = math.tanh %25 : vector<2x32xf32>
    %27 = arith.mulf %23, %11 : vector<2x32xf32>
    %28 = arith.mulf %22, %26 : vector<2x32xf32>
    %29 = arith.addf %27, %28 : vector<2x32xf32>
    %30 = math.tanh %29 : vector<2x32xf32>
    %31 = arith.mulf %24, %30 : vector<2x32xf32>
    %32 = arith.index_cast %c0_i32 : i32 to index
    %c0_17 = arith.constant 0 : index
    %c0_18 = arith.constant 0 : index
    %33 = vector.load %arg8[%32, %c0_17, %c0_18] : memref<8x2x32xf32, #tpu.memory_space<vmem>>, vector<1x2x32xf32>
    %34 = vector.shape_cast %33 : vector<1x2x32xf32> to vector<2x32xf32>
    %35 = vector.shape_cast %31 : vector<2x32xf32> to vector<1x2x32xf32>
    tpu.vector_store %arg8[%32, %c0_17, %c0_18], %35 {strides = array<i32>} : memref<8x2x32xf32, #tpu.memory_space<vmem>>, vector<1x2x32xf32>,
    %c1_i32 = arith.constant 1 : i32
    %36 = arith.index_cast %c1_i32 : i32 to index
    %c0_19 = arith.constant 0 : index
    %c0_20 = arith.constant 0 : index
    %37 = vector.load %arg9[%36, %c0_19, %c0_20] : memref<8x2x128xf32, #tpu.memory_space<vmem>>, vector<1x2x128xf32>
    %38 = vector.shape_cast %37 : vector<1x2x128xf32> to vector<2x128xf32>
    %cst_21 = arith.constant dense<0.000000e+00> : vector<2x128xf32>
    %39 = tpu.matmul %31, %9, %cst_21 {dimension_numbers = #tpu.dot_dimension_numbers<[1], [0], [0], [1], [0, 0, 1, 1], [], []>} : vector<2x32xf32>, vector<32x128xf32>, vector<2x128xf32> -> vector<2x128xf32>
    %40 = arith.addf %38, %39 : vector<2x128xf32>
    %41 = arith.negf %40 : vector<2x128xf32>
    %42 = math.exp %41 : vector<2x128xf32>
    %cst_22 = arith.constant 1.000000e+00 : f32
    %43 = vector.broadcast %cst_22 : f32 to vector<2x128xf32>
    %44 = arith.addf %43, %42 : vector<2x128xf32>
    %45 = arith.divf %43, %44 : vector<2x128xf32>
    %46 = vector.extract_strided_slice %45 {offsets = [0, 0], sizes = [2, 32], strides = [1, 1]} : vector<2x128xf32> to vector<2x32xf32>
    %47 = vector.extract_strided_slice %45 {offsets = [0, 32], sizes = [2, 32], strides = [1, 1]} : vector<2x128xf32> to vector<2x32xf32>
    %48 = vector.extract_strided_slice %45 {offsets = [0, 96], sizes = [2, 32], strides = [1, 1]} : vector<2x128xf32> to vector<2x32xf32>
    %49 = vector.extract_strided_slice %40 {offsets = [0, 64], sizes = [2, 32], strides = [1, 1]} : vector<2x128xf32> to vector<2x32xf32>
    %50 = math.tanh %49 : vector<2x32xf32>
    %51 = arith.mulf %47, %29 : vector<2x32xf32>
    %52 = arith.mulf %46, %50 : vector<2x32xf32>
    %53 = arith.addf %51, %52 : vector<2x32xf32>
    %54 = math.tanh %53 : vector<2x32xf32>
    %55 = arith.mulf %48, %54 : vector<2x32xf32>
    %56 = arith.index_cast %c1_i32 : i32 to index
    %c0_23 = arith.constant 0 : index
    %c0_24 = arith.constant 0 : index
    %57 = vector.load %arg8[%56, %c0_23, %c0_24] : memref<8x2x32xf32, #tpu.memory_space<vmem>>, vector<1x2x32xf32>
    %58 = vector.shape_cast %57 : vector<1x2x32xf32> to vector<2x32xf32>
    %59 = vector.shape_cast %55 : vector<2x32xf32> to vector<1x2x32xf32>
    tpu.vector_store %arg8[%56, %c0_23, %c0_24], %59 {strides = array<i32>} : memref<8x2x32xf32, #tpu.memory_space<vmem>>, vector<1x2x32xf32>,
    %c2_i32 = arith.constant 2 : i32
    %60 = arith.index_cast %c2_i32 : i32 to index
    %c0_25 = arith.constant 0 : index
    %c0_26 = arith.constant 0 : index
    %61 = vector.load %arg9[%60, %c0_25, %c0_26] : memref<8x2x128xf32, #tpu.memory_space<vmem>>, vector<1x2x128xf32>
    %62 = vector.shape_cast %61 : vector<1x2x128xf32> to vector<2x128xf32>
    %cst_27 = arith.constant dense<0.000000e+00> : vector<2x128xf32>
    %63 = tpu.matmul %55, %9, %cst_27 {dimension_numbers = #tpu.dot_dimension_numbers<[1], [0], [0], [1], [0, 0, 1, 1], [], []>} : vector<2x32xf32>, vector<32x128xf32>, vector<2x128xf32> -> vector<2x128xf32>
    %64 = arith.addf %62, %63 : vector<2x128xf32>
    %65 = arith.negf %64 : vector<2x128xf32>
    %66 = math.exp %65 : vector<2x128xf32>
    %cst_28 = arith.constant 1.000000e+00 : f32
    %67 = vector.broadcast %cst_28 : f32 to vector<2x128xf32>
    %68 = arith.addf %67, %66 : vector<2x128xf32>
    %69 = arith.divf %67, %68 : vector<2x128xf32>
    %70 = vector.extract_strided_slice %69 {offsets = [0, 0], sizes = [2, 32], strides = [1, 1]} : vector<2x128xf32> to vector<2x32xf32>
    %71 = vector.extract_strided_slice %69 {offsets = [0, 32], sizes = [2, 32], strides = [1, 1]} : vector<2x128xf32> to vector<2x32xf32>
    %72 = vector.extract_strided_slice %69 {offsets = [0, 96], sizes = [2, 32], strides = [1, 1]} : vector<2x128xf32> to vector<2x32xf32>
    %73 = vector.extract_strided_slice %64 {offsets = [0, 64], sizes = [2, 32], strides = [1, 1]} : vector<2x128xf32> to vector<2x32xf32>
    %74 = math.tanh %73 : vector<2x32xf32>
    %75 = arith.mulf %71, %53 : vector<2x32xf32>
    %76 = arith.mulf %70, %74 : vector<2x32xf32>
    %77 = arith.addf %75, %76 : vector<2x32xf32>
    %78 = math.tanh %77 : vector<2x32xf32>
    %79 = arith.mulf %72, %78 : vector<2x32xf32>
    %80 = arith.index_cast %c2_i32 : i32 to index
    %c0_29 = arith.constant 0 : index
    %c0_30 = arith.constant 0 : index
    %81 = vector.load %arg8[%80, %c0_29, %c0_30] : memref<8x2x32xf32, #tpu.memory_space<vmem>>, vector<1x2x32xf32>
    %82 = vector.shape_cast %81 : vector<1x2x32xf32> to vector<2x32xf32>
    %83 = vector.shape_cast %79 : vector<2x32xf32> to vector<1x2x32xf32>
    tpu.vector_store %arg8[%80, %c0_29, %c0_30], %83 {strides = array<i32>} : memref<8x2x32xf32, #tpu.memory_space<vmem>>, vector<1x2x32xf32>,
    %c3_i32 = arith.constant 3 : i32
    %84 = arith.index_cast %c3_i32 : i32 to index
    %c0_31 = arith.constant 0 : index
    %c0_32 = arith.constant 0 : index
    %85 = vector.load %arg9[%84, %c0_31, %c0_32] : memref<8x2x128xf32, #tpu.memory_space<vmem>>, vector<1x2x128xf32>
    %86 = vector.shape_cast %85 : vector<1x2x128xf32> to vector<2x128xf32>
    %cst_33 = arith.constant dense<0.000000e+00> : vector<2x128xf32>
    %87 = tpu.matmul %79, %9, %cst_33 {dimension_numbers = #tpu.dot_dimension_numbers<[1], [0], [0], [1], [0, 0, 1, 1], [], []>} : vector<2x32xf32>, vector<32x128xf32>, vector<2x128xf32> -> vector<2x128xf32>
    %88 = arith.addf %86, %87 : vector<2x128xf32>
    %89 = arith.negf %88 : vector<2x128xf32>
    %90 = math.exp %89 : vector<2x128xf32>
    %cst_34 = arith.constant 1.000000e+00 : f32
    %91 = vector.broadcast %cst_34 : f32 to vector<2x128xf32>
    %92 = arith.addf %91, %90 : vector<2x128xf32>
    %93 = arith.divf %91, %92 : vector<2x128xf32>
    %94 = vector.extract_strided_slice %93 {offsets = [0, 0], sizes = [2, 32], strides = [1, 1]} : vector<2x128xf32> to vector<2x32xf32>
    %95 = vector.extract_strided_slice %93 {offsets = [0, 32], sizes = [2, 32], strides = [1, 1]} : vector<2x128xf32> to vector<2x32xf32>
    %96 = vector.extract_strided_slice %93 {offsets = [0, 96], sizes = [2, 32], strides = [1, 1]} : vector<2x128xf32> to vector<2x32xf32>
    %97 = vector.extract_strided_slice %88 {offsets = [0, 64], sizes = [2, 32], strides = [1, 1]} : vector<2x128xf32> to vector<2x32xf32>
    %98 = math.tanh %97 : vector<2x32xf32>
    %99 = arith.mulf %95, %77 : vector<2x32xf32>
    %100 = arith.mulf %94, %98 : vector<2x32xf32>
    %101 = arith.addf %99, %100 : vector<2x32xf32>
    %102 = math.tanh %101 : vector<2x32xf32>
    %103 = arith.mulf %96, %102 : vector<2x32xf32>
    %104 = arith.index_cast %c3_i32 : i32 to index
    %c0_35 = arith.constant 0 : index
    %c0_36 = arith.constant 0 : index
    %105 = vector.load %arg8[%104, %c0_35, %c0_36] : memref<8x2x32xf32, #tpu.memory_space<vmem>>, vector<1x2x32xf32>
    %106 = vector.shape_cast %105 : vector<1x2x32xf32> to vector<2x32xf32>
    %107 = vector.shape_cast %103 : vector<2x32xf32> to vector<1x2x32xf32>
    tpu.vector_store %arg8[%104, %c0_35, %c0_36], %107 {strides = array<i32>} : memref<8x2x32xf32, #tpu.memory_space<vmem>>, vector<1x2x32xf32>,
    %c4_i32 = arith.constant 4 : i32
    %108 = arith.index_cast %c4_i32 : i32 to index
    %c0_37 = arith.constant 0 : index
    %c0_38 = arith.constant 0 : index
    %109 = vector.load %arg9[%108, %c0_37, %c0_38] : memref<8x2x128xf32, #tpu.memory_space<vmem>>, vector<1x2x128xf32>
    %110 = vector.shape_cast %109 : vector<1x2x128xf32> to vector<2x128xf32>
    %cst_39 = arith.constant dense<0.000000e+00> : vector<2x128xf32>
    %111 = tpu.matmul %103, %9, %cst_39 {dimension_numbers = #tpu.dot_dimension_numbers<[1], [0], [0], [1], [0, 0, 1, 1], [], []>} : vector<2x32xf32>, vector<32x128xf32>, vector<2x128xf32> -> vector<2x128xf32>
    %112 = arith.addf %110, %111 : vector<2x128xf32>
    %113 = arith.negf %112 : vector<2x128xf32>
    %114 = math.exp %113 : vector<2x128xf32>
    %cst_40 = arith.constant 1.000000e+00 : f32
    %115 = vector.broadcast %cst_40 : f32 to vector<2x128xf32>
    %116 = arith.addf %115, %114 : vector<2x128xf32>
    %117 = arith.divf %115, %116 : vector<2x128xf32>
    %118 = vector.extract_strided_slice %117 {offsets = [0, 0], sizes = [2, 32], strides = [1, 1]} : vector<2x128xf32> to vector<2x32xf32>
    %119 = vector.extract_strided_slice %117 {offsets = [0, 32], sizes = [2, 32], strides = [1, 1]} : vector<2x128xf32> to vector<2x32xf32>
    %120 = vector.extract_strided_slice %117 {offsets = [0, 96], sizes = [2, 32], strides = [1, 1]} : vector<2x128xf32> to vector<2x32xf32>
    %121 = vector.extract_strided_slice %112 {offsets = [0, 64], sizes = [2, 32], strides = [1, 1]} : vector<2x128xf32> to vector<2x32xf32>
    %122 = math.tanh %121 : vector<2x32xf32>
    %123 = arith.mulf %119, %101 : vector<2x32xf32>
    %124 = arith.mulf %118, %122 : vector<2x32xf32>
    %125 = arith.addf %123, %124 : vector<2x32xf32>
    %126 = math.tanh %125 : vector<2x32xf32>
    %127 = arith.mulf %120, %126 : vector<2x32xf32>
    %128 = arith.index_cast %c4_i32 : i32 to index
    %c0_41 = arith.constant 0 : index
    %c0_42 = arith.constant 0 : index
    %129 = vector.load %arg8[%128, %c0_41, %c0_42] : memref<8x2x32xf32, #tpu.memory_space<vmem>>, vector<1x2x32xf32>
    %130 = vector.shape_cast %129 : vector<1x2x32xf32> to vector<2x32xf32>
    %131 = vector.shape_cast %127 : vector<2x32xf32> to vector<1x2x32xf32>
    tpu.vector_store %arg8[%128, %c0_41, %c0_42], %131 {strides = array<i32>} : memref<8x2x32xf32, #tpu.memory_space<vmem>>, vector<1x2x32xf32>,
    %c5_i32 = arith.constant 5 : i32
    %132 = arith.index_cast %c5_i32 : i32 to index
    %c0_43 = arith.constant 0 : index
    %c0_44 = arith.constant 0 : index
    %133 = vector.load %arg9[%132, %c0_43, %c0_44] : memref<8x2x128xf32, #tpu.memory_space<vmem>>, vector<1x2x128xf32>
    %134 = vector.shape_cast %133 : vector<1x2x128xf32> to vector<2x128xf32>
    %cst_45 = arith.constant dense<0.000000e+00> : vector<2x128xf32>
    %135 = tpu.matmul %127, %9, %cst_45 {dimension_numbers = #tpu.dot_dimension_numbers<[1], [0], [0], [1], [0, 0, 1, 1], [], []>} : vector<2x32xf32>, vector<32x128xf32>, vector<2x128xf32> -> vector<2x128xf32>
    %136 = arith.addf %134, %135 : vector<2x128xf32>
    %137 = arith.negf %136 : vector<2x128xf32>
    %138 = math.exp %137 : vector<2x128xf32>
    %cst_46 = arith.constant 1.000000e+00 : f32
    %139 = vector.broadcast %cst_46 : f32 to vector<2x128xf32>
    %140 = arith.addf %139, %138 : vector<2x128xf32>
    %141 = arith.divf %139, %140 : vector<2x128xf32>
    %142 = vector.extract_strided_slice %141 {offsets = [0, 0], sizes = [2, 32], strides = [1, 1]} : vector<2x128xf32> to vector<2x32xf32>
    %143 = vector.extract_strided_slice %141 {offsets = [0, 32], sizes = [2, 32], strides = [1, 1]} : vector<2x128xf32> to vector<2x32xf32>
    %144 = vector.extract_strided_slice %141 {offsets = [0, 96], sizes = [2, 32], strides = [1, 1]} : vector<2x128xf32> to vector<2x32xf32>
    %145 = vector.extract_strided_slice %136 {offsets = [0, 64], sizes = [2, 32], strides = [1, 1]} : vector<2x128xf32> to vector<2x32xf32>
    %146 = math.tanh %145 : vector<2x32xf32>
    %147 = arith.mulf %143, %125 : vector<2x32xf32>
    %148 = arith.mulf %142, %146 : vector<2x32xf32>
    %149 = arith.addf %147, %148 : vector<2x32xf32>
    %150 = math.tanh %149 : vector<2x32xf32>
    %151 = arith.mulf %144, %150 : vector<2x32xf32>
    %152 = arith.index_cast %c5_i32 : i32 to index
    %c0_47 = arith.constant 0 : index
    %c0_48 = arith.constant 0 : index
    %153 = vector.load %arg8[%152, %c0_47, %c0_48] : memref<8x2x32xf32, #tpu.memory_space<vmem>>, vector<1x2x32xf32>
    %154 = vector.shape_cast %153 : vector<1x2x32xf32> to vector<2x32xf32>
    %155 = vector.shape_cast %151 : vector<2x32xf32> to vector<1x2x32xf32>
    tpu.vector_store %arg8[%152, %c0_47, %c0_48], %155 {strides = array<i32>} : memref<8x2x32xf32, #tpu.memory_space<vmem>>, vector<1x2x32xf32>,
    %c6_i32 = arith.constant 6 : i32
    %156 = arith.index_cast %c6_i32 : i32 to index
    %c0_49 = arith.constant 0 : index
    %c0_50 = arith.constant 0 : index
    %157 = vector.load %arg9[%156, %c0_49, %c0_50] : memref<8x2x128xf32, #tpu.memory_space<vmem>>, vector<1x2x128xf32>
    %158 = vector.shape_cast %157 : vector<1x2x128xf32> to vector<2x128xf32>
    %cst_51 = arith.constant dense<0.000000e+00> : vector<2x128xf32>
    %159 = tpu.matmul %151, %9, %cst_51 {dimension_numbers = #tpu.dot_dimension_numbers<[1], [0], [0], [1], [0, 0, 1, 1], [], []>} : vector<2x32xf32>, vector<32x128xf32>, vector<2x128xf32> -> vector<2x128xf32>
    %160 = arith.addf %158, %159 : vector<2x128xf32>
    %161 = arith.negf %160 : vector<2x128xf32>
    %162 = math.exp %161 : vector<2x128xf32>
    %cst_52 = arith.constant 1.000000e+00 : f32
    %163 = vector.broadcast %cst_52 : f32 to vector<2x128xf32>
    %164 = arith.addf %163, %162 : vector<2x128xf32>
    %165 = arith.divf %163, %164 : vector<2x128xf32>
    %166 = vector.extract_strided_slice %165 {offsets = [0, 0], sizes = [2, 32], strides = [1, 1]} : vector<2x128xf32> to vector<2x32xf32>
    %167 = vector.extract_strided_slice %165 {offsets = [0, 32], sizes = [2, 32], strides = [1, 1]} : vector<2x128xf32> to vector<2x32xf32>
    %168 = vector.extract_strided_slice %165 {offsets = [0, 96], sizes = [2, 32], strides = [1, 1]} : vector<2x128xf32> to vector<2x32xf32>
    %169 = vector.extract_strided_slice %160 {offsets = [0, 64], sizes = [2, 32], strides = [1, 1]} : vector<2x128xf32> to vector<2x32xf32>
    %170 = math.tanh %169 : vector<2x32xf32>
    %171 = arith.mulf %167, %149 : vector<2x32xf32>
    %172 = arith.mulf %166, %170 : vector<2x32xf32>
    %173 = arith.addf %171, %172 : vector<2x32xf32>
    %174 = math.tanh %173 : vector<2x32xf32>
    %175 = arith.mulf %168, %174 : vector<2x32xf32>
    %176 = arith.index_cast %c6_i32 : i32 to index
    %c0_53 = arith.constant 0 : index
    %c0_54 = arith.constant 0 : index
    %177 = vector.load %arg8[%176, %c0_53, %c0_54] : memref<8x2x32xf32, #tpu.memory_space<vmem>>, vector<1x2x32xf32>
    %178 = vector.shape_cast %177 : vector<1x2x32xf32> to vector<2x32xf32>
    %179 = vector.shape_cast %175 : vector<2x32xf32> to vector<1x2x32xf32>
    tpu.vector_store %arg8[%176, %c0_53, %c0_54], %179 {strides = array<i32>} : memref<8x2x32xf32, #tpu.memory_space<vmem>>, vector<1x2x32xf32>,
    %c7_i32 = arith.constant 7 : i32
    %180 = arith.index_cast %c7_i32 : i32 to index
    %c0_55 = arith.constant 0 : index
    %c0_56 = arith.constant 0 : index
    %181 = vector.load %arg9[%180, %c0_55, %c0_56] : memref<8x2x128xf32, #tpu.memory_space<vmem>>, vector<1x2x128xf32>
    %182 = vector.shape_cast %181 : vector<1x2x128xf32> to vector<2x128xf32>
    %cst_57 = arith.constant dense<0.000000e+00> : vector<2x128xf32>
    %183 = tpu.matmul %175, %9, %cst_57 {dimension_numbers = #tpu.dot_dimension_numbers<[1], [0], [0], [1], [0, 0, 1, 1], [], []>} : vector<2x32xf32>, vector<32x128xf32>, vector<2x128xf32> -> vector<2x128xf32>
    %184 = arith.addf %182, %183 : vector<2x128xf32>
    %185 = arith.negf %184 : vector<2x128xf32>
    %186 = math.exp %185 : vector<2x128xf32>
    %cst_58 = arith.constant 1.000000e+00 : f32
    %187 = vector.broadcast %cst_58 : f32 to vector<2x128xf32>
    %188 = arith.addf %187, %186 : vector<2x128xf32>
    %189 = arith.divf %187, %188 : vector<2x128xf32>
    %190 = vector.extract_strided_slice %189 {offsets = [0, 0], sizes = [2, 32], strides = [1, 1]} : vector<2x128xf32> to vector<2x32xf32>
    %191 = vector.extract_strided_slice %189 {offsets = [0, 32], sizes = [2, 32], strides = [1, 1]} : vector<2x128xf32> to vector<2x32xf32>
    %192 = vector.extract_strided_slice %189 {offsets = [0, 96], sizes = [2, 32], strides = [1, 1]} : vector<2x128xf32> to vector<2x32xf32>
    %193 = vector.extract_strided_slice %184 {offsets = [0, 64], sizes = [2, 32], strides = [1, 1]} : vector<2x128xf32> to vector<2x32xf32>
    %194 = math.tanh %193 : vector<2x32xf32>
    %195 = arith.mulf %191, %173 : vector<2x32xf32>
    %196 = arith.mulf %190, %194 : vector<2x32xf32>
    %197 = arith.addf %195, %196 : vector<2x32xf32>
    %198 = math.tanh %197 : vector<2x32xf32>
    %199 = arith.mulf %192, %198 : vector<2x32xf32>
    %200 = arith.index_cast %c7_i32 : i32 to index
    %c0_59 = arith.constant 0 : index
    %c0_60 = arith.constant 0 : index
    %201 = vector.load %arg8[%200, %c0_59, %c0_60] : memref<8x2x32xf32, #tpu.memory_space<vmem>>, vector<1x2x32xf32>
    %202 = vector.shape_cast %201 : vector<1x2x32xf32> to vector<2x32xf32>
    %203 = vector.shape_cast %199 : vector<2x32xf32> to vector<1x2x32xf32>
    tpu.vector_store %arg8[%200, %c0_59, %c0_60], %203 {strides = array<i32>} : memref<8x2x32xf32, #tpu.memory_space<vmem>>, vector<1x2x32xf32>,
    %c8_i32 = arith.constant 8 : i32
    %c0_61 = arith.constant 0 : index
    %c0_62 = arith.constant 0 : index
    %c0_63 = arith.constant 0 : index
    %204 = vector.load %arg8[%c0_61, %c0_62, %c0_63] : memref<8x2x32xf32, #tpu.memory_space<vmem>>, vector<8x2x32xf32>
    %205 = vector.shape_cast %204 : vector<8x2x32xf32> to vector<16x32xf32>
    %c0_64 = arith.constant 0 : index
    %c0_65 = arith.constant 0 : index
    %206 = vector.load %arg4[%c0_64, %c0_65] : memref<32x128xf32, #tpu.memory_space<vmem>>, vector<32x128xf32>
    %cst_66 = arith.constant dense<0.000000e+00> : vector<16x128xf32>
    %207 = tpu.matmul %205, %206, %cst_66 {dimension_numbers = #tpu.dot_dimension_numbers<[1], [0], [0], [1], [0, 0, 1, 1], [], []>} : vector<16x32xf32>, vector<32x128xf32>, vector<16x128xf32> -> vector<16x128xf32>
    %c0_67 = arith.constant 0 : index
    %c0_68 = arith.constant 0 : index
    %208 = vector.load %arg6[%c0_67, %c0_68] : memref<1x128xf32, #tpu.memory_space<vmem>>, vector<1x128xf32>
    %209 = vector.broadcast %208 : vector<1x128xf32> to vector<16x128xf32>
    %210 = arith.addf %207, %209 : vector<16x128xf32>
    %211 = vector.shape_cast %210 : vector<16x128xf32> to vector<8x2x128xf32>
    %c0_69 = arith.constant 0 : index
    %c0_70 = arith.constant 0 : index
    %c0_71 = arith.constant 0 : index
    %212 = vector.load %arg9[%c0_69, %c0_70, %c0_71] : memref<8x2x128xf32, #tpu.memory_space<vmem>>, vector<8x2x128xf32>
    tpu.vector_store %arg9[%c0_69, %c0_70, %c0_71], %211 {strides = array<i32>} : memref<8x2x128xf32, #tpu.memory_space<vmem>>, vector<8x2x128xf32>,
    %c0_72 = arith.constant 0 : index
    %c0_73 = arith.constant 0 : index
    %213 = vector.load %arg5[%c0_72, %c0_73] : memref<32x128xf32, #tpu.memory_space<vmem>>, vector<32x128xf32>
    %cst_74 = arith.constant 0.000000e+00 : f32
    %214 = vector.broadcast %cst_74 : f32 to vector<2x32xf32>
    %cst_75 = arith.constant 0.000000e+00 : f32
    %215 = vector.broadcast %cst_75 : f32 to vector<2x32xf32>
    %c0_i32_76 = arith.constant 0 : i32
    %216 = arith.index_cast %c0_i32_76 : i32 to index
    %c0_77 = arith.constant 0 : index
    %c0_78 = arith.constant 0 : index
    %217 = vector.load %arg9[%216, %c0_77, %c0_78] : memref<8x2x128xf32, #tpu.memory_space<vmem>>, vector<1x2x128xf32>
    %218 = vector.shape_cast %217 : vector<1x2x128xf32> to vector<2x128xf32>
    %cst_79 = arith.constant dense<0.000000e+00> : vector<2x128xf32>
    %219 = tpu.matmul %214, %213, %cst_79 {dimension_numbers = #tpu.dot_dimension_numbers<[1], [0], [0], [1], [0, 0, 1, 1], [], []>} : vector<2x32xf32>, vector<32x128xf32>, vector<2x128xf32> -> vector<2x128xf32>
    %220 = arith.addf %218, %219 : vector<2x128xf32>
    %221 = arith.negf %220 : vector<2x128xf32>
    %222 = math.exp %221 : vector<2x128xf32>
    %cst_80 = arith.constant 1.000000e+00 : f32
    %223 = vector.broadcast %cst_80 : f32 to vector<2x128xf32>
    %224 = arith.addf %223, %222 : vector<2x128xf32>
    %225 = arith.divf %223, %224 : vector<2x128xf32>
    %226 = vector.extract_strided_slice %225 {offsets = [0, 0], sizes = [2, 32], strides = [1, 1]} : vector<2x128xf32> to vector<2x32xf32>
    %227 = vector.extract_strided_slice %225 {offsets = [0, 32], sizes = [2, 32], strides = [1, 1]} : vector<2x128xf32> to vector<2x32xf32>
    %228 = vector.extract_strided_slice %225 {offsets = [0, 96], sizes = [2, 32], strides = [1, 1]} : vector<2x128xf32> to vector<2x32xf32>
    %229 = vector.extract_strided_slice %220 {offsets = [0, 64], sizes = [2, 32], strides = [1, 1]} : vector<2x128xf32> to vector<2x32xf32>
    %230 = math.tanh %229 : vector<2x32xf32>
    %231 = arith.mulf %227, %215 : vector<2x32xf32>
    %232 = arith.mulf %226, %230 : vector<2x32xf32>
    %233 = arith.addf %231, %232 : vector<2x32xf32>
    %234 = math.tanh %233 : vector<2x32xf32>
    %235 = arith.mulf %228, %234 : vector<2x32xf32>
    %236 = arith.index_cast %c0_i32_76 : i32 to index
    %c0_81 = arith.constant 0 : index
    %c0_82 = arith.constant 0 : index
    %237 = vector.load %arg7[%236, %c0_81, %c0_82] : memref<8x2x32xf32, #tpu.memory_space<vmem>>, vector<1x2x32xf32>
    %238 = vector.shape_cast %237 : vector<1x2x32xf32> to vector<2x32xf32>
    %239 = vector.shape_cast %235 : vector<2x32xf32> to vector<1x2x32xf32>
    tpu.vector_store %arg7[%236, %c0_81, %c0_82], %239 {strides = array<i32>} : memref<8x2x32xf32, #tpu.memory_space<vmem>>, vector<1x2x32xf32>,
    %c1_i32_83 = arith.constant 1 : i32
    %240 = arith.index_cast %c1_i32_83 : i32 to index
    %c0_84 = arith.constant 0 : index
    %c0_85 = arith.constant 0 : index
    %241 = vector.load %arg9[%240, %c0_84, %c0_85] : memref<8x2x128xf32, #tpu.memory_space<vmem>>, vector<1x2x128xf32>
    %242 = vector.shape_cast %241 : vector<1x2x128xf32> to vector<2x128xf32>
    %cst_86 = arith.constant dense<0.000000e+00> : vector<2x128xf32>
    %243 = tpu.matmul %235, %213, %cst_86 {dimension_numbers = #tpu.dot_dimension_numbers<[1], [0], [0], [1], [0, 0, 1, 1], [], []>} : vector<2x32xf32>, vector<32x128xf32>, vector<2x128xf32> -> vector<2x128xf32>
    %244 = arith.addf %242, %243 : vector<2x128xf32>
    %245 = arith.negf %244 : vector<2x128xf32>
    %246 = math.exp %245 : vector<2x128xf32>
    %cst_87 = arith.constant 1.000000e+00 : f32
    %247 = vector.broadcast %cst_87 : f32 to vector<2x128xf32>
    %248 = arith.addf %247, %246 : vector<2x128xf32>
    %249 = arith.divf %247, %248 : vector<2x128xf32>
    %250 = vector.extract_strided_slice %249 {offsets = [0, 0], sizes = [2, 32], strides = [1, 1]} : vector<2x128xf32> to vector<2x32xf32>
    %251 = vector.extract_strided_slice %249 {offsets = [0, 32], sizes = [2, 32], strides = [1, 1]} : vector<2x128xf32> to vector<2x32xf32>
    %252 = vector.extract_strided_slice %249 {offsets = [0, 96], sizes = [2, 32], strides = [1, 1]} : vector<2x128xf32> to vector<2x32xf32>
    %253 = vector.extract_strided_slice %244 {offsets = [0, 64], sizes = [2, 32], strides = [1, 1]} : vector<2x128xf32> to vector<2x32xf32>
    %254 = math.tanh %253 : vector<2x32xf32>
    %255 = arith.mulf %251, %233 : vector<2x32xf32>
    %256 = arith.mulf %250, %254 : vector<2x32xf32>
    %257 = arith.addf %255, %256 : vector<2x32xf32>
    %258 = math.tanh %257 : vector<2x32xf32>
    %259 = arith.mulf %252, %258 : vector<2x32xf32>
    %260 = arith.index_cast %c1_i32_83 : i32 to index
    %c0_88 = arith.constant 0 : index
    %c0_89 = arith.constant 0 : index
    %261 = vector.load %arg7[%260, %c0_88, %c0_89] : memref<8x2x32xf32, #tpu.memory_space<vmem>>, vector<1x2x32xf32>
    %262 = vector.shape_cast %261 : vector<1x2x32xf32> to vector<2x32xf32>
    %263 = vector.shape_cast %259 : vector<2x32xf32> to vector<1x2x32xf32>
    tpu.vector_store %arg7[%260, %c0_88, %c0_89], %263 {strides = array<i32>} : memref<8x2x32xf32, #tpu.memory_space<vmem>>, vector<1x2x32xf32>,
    %c2_i32_90 = arith.constant 2 : i32
    %264 = arith.index_cast %c2_i32_90 : i32 to index
    %c0_91 = arith.constant 0 : index
    %c0_92 = arith.constant 0 : index
    %265 = vector.load %arg9[%264, %c0_91, %c0_92] : memref<8x2x128xf32, #tpu.memory_space<vmem>>, vector<1x2x128xf32>
    %266 = vector.shape_cast %265 : vector<1x2x128xf32> to vector<2x128xf32>
    %cst_93 = arith.constant dense<0.000000e+00> : vector<2x128xf32>
    %267 = tpu.matmul %259, %213, %cst_93 {dimension_numbers = #tpu.dot_dimension_numbers<[1], [0], [0], [1], [0, 0, 1, 1], [], []>} : vector<2x32xf32>, vector<32x128xf32>, vector<2x128xf32> -> vector<2x128xf32>
    %268 = arith.addf %266, %267 : vector<2x128xf32>
    %269 = arith.negf %268 : vector<2x128xf32>
    %270 = math.exp %269 : vector<2x128xf32>
    %cst_94 = arith.constant 1.000000e+00 : f32
    %271 = vector.broadcast %cst_94 : f32 to vector<2x128xf32>
    %272 = arith.addf %271, %270 : vector<2x128xf32>
    %273 = arith.divf %271, %272 : vector<2x128xf32>
    %274 = vector.extract_strided_slice %273 {offsets = [0, 0], sizes = [2, 32], strides = [1, 1]} : vector<2x128xf32> to vector<2x32xf32>
    %275 = vector.extract_strided_slice %273 {offsets = [0, 32], sizes = [2, 32], strides = [1, 1]} : vector<2x128xf32> to vector<2x32xf32>
    %276 = vector.extract_strided_slice %273 {offsets = [0, 96], sizes = [2, 32], strides = [1, 1]} : vector<2x128xf32> to vector<2x32xf32>
    %277 = vector.extract_strided_slice %268 {offsets = [0, 64], sizes = [2, 32], strides = [1, 1]} : vector<2x128xf32> to vector<2x32xf32>
    %278 = math.tanh %277 : vector<2x32xf32>
    %279 = arith.mulf %275, %257 : vector<2x32xf32>
    %280 = arith.mulf %274, %278 : vector<2x32xf32>
    %281 = arith.addf %279, %280 : vector<2x32xf32>
    %282 = math.tanh %281 : vector<2x32xf32>
    %283 = arith.mulf %276, %282 : vector<2x32xf32>
    %284 = arith.index_cast %c2_i32_90 : i32 to index
    %c0_95 = arith.constant 0 : index
    %c0_96 = arith.constant 0 : index
    %285 = vector.load %arg7[%284, %c0_95, %c0_96] : memref<8x2x32xf32, #tpu.memory_space<vmem>>, vector<1x2x32xf32>
    %286 = vector.shape_cast %285 : vector<1x2x32xf32> to vector<2x32xf32>
    %287 = vector.shape_cast %283 : vector<2x32xf32> to vector<1x2x32xf32>
    tpu.vector_store %arg7[%284, %c0_95, %c0_96], %287 {strides = array<i32>} : memref<8x2x32xf32, #tpu.memory_space<vmem>>, vector<1x2x32xf32>,
    %c3_i32_97 = arith.constant 3 : i32
    %288 = arith.index_cast %c3_i32_97 : i32 to index
    %c0_98 = arith.constant 0 : index
    %c0_99 = arith.constant 0 : index
    %289 = vector.load %arg9[%288, %c0_98, %c0_99] : memref<8x2x128xf32, #tpu.memory_space<vmem>>, vector<1x2x128xf32>
    %290 = vector.shape_cast %289 : vector<1x2x128xf32> to vector<2x128xf32>
    %cst_100 = arith.constant dense<0.000000e+00> : vector<2x128xf32>
    %291 = tpu.matmul %283, %213, %cst_100 {dimension_numbers = #tpu.dot_dimension_numbers<[1], [0], [0], [1], [0, 0, 1, 1], [], []>} : vector<2x32xf32>, vector<32x128xf32>, vector<2x128xf32> -> vector<2x128xf32>
    %292 = arith.addf %290, %291 : vector<2x128xf32>
    %293 = arith.negf %292 : vector<2x128xf32>
    %294 = math.exp %293 : vector<2x128xf32>
    %cst_101 = arith.constant 1.000000e+00 : f32
    %295 = vector.broadcast %cst_101 : f32 to vector<2x128xf32>
    %296 = arith.addf %295, %294 : vector<2x128xf32>
    %297 = arith.divf %295, %296 : vector<2x128xf32>
    %298 = vector.extract_strided_slice %297 {offsets = [0, 0], sizes = [2, 32], strides = [1, 1]} : vector<2x128xf32> to vector<2x32xf32>
    %299 = vector.extract_strided_slice %297 {offsets = [0, 32], sizes = [2, 32], strides = [1, 1]} : vector<2x128xf32> to vector<2x32xf32>
    %300 = vector.extract_strided_slice %297 {offsets = [0, 96], sizes = [2, 32], strides = [1, 1]} : vector<2x128xf32> to vector<2x32xf32>
    %301 = vector.extract_strided_slice %292 {offsets = [0, 64], sizes = [2, 32], strides = [1, 1]} : vector<2x128xf32> to vector<2x32xf32>
    %302 = math.tanh %301 : vector<2x32xf32>
    %303 = arith.mulf %299, %281 : vector<2x32xf32>
    %304 = arith.mulf %298, %302 : vector<2x32xf32>
    %305 = arith.addf %303, %304 : vector<2x32xf32>
    %306 = math.tanh %305 : vector<2x32xf32>
    %307 = arith.mulf %300, %306 : vector<2x32xf32>
    %308 = arith.index_cast %c3_i32_97 : i32 to index
    %c0_102 = arith.constant 0 : index
    %c0_103 = arith.constant 0 : index
    %309 = vector.load %arg7[%308, %c0_102, %c0_103] : memref<8x2x32xf32, #tpu.memory_space<vmem>>, vector<1x2x32xf32>
    %310 = vector.shape_cast %309 : vector<1x2x32xf32> to vector<2x32xf32>
    %311 = vector.shape_cast %307 : vector<2x32xf32> to vector<1x2x32xf32>
    tpu.vector_store %arg7[%308, %c0_102, %c0_103], %311 {strides = array<i32>} : memref<8x2x32xf32, #tpu.memory_space<vmem>>, vector<1x2x32xf32>,
    %c4_i32_104 = arith.constant 4 : i32
    %312 = arith.index_cast %c4_i32_104 : i32 to index
    %c0_105 = arith.constant 0 : index
    %c0_106 = arith.constant 0 : index
    %313 = vector.load %arg9[%312, %c0_105, %c0_106] : memref<8x2x128xf32, #tpu.memory_space<vmem>>, vector<1x2x128xf32>
    %314 = vector.shape_cast %313 : vector<1x2x128xf32> to vector<2x128xf32>
    %cst_107 = arith.constant dense<0.000000e+00> : vector<2x128xf32>
    %315 = tpu.matmul %307, %213, %cst_107 {dimension_numbers = #tpu.dot_dimension_numbers<[1], [0], [0], [1], [0, 0, 1, 1], [], []>} : vector<2x32xf32>, vector<32x128xf32>, vector<2x128xf32> -> vector<2x128xf32>
    %316 = arith.addf %314, %315 : vector<2x128xf32>
    %317 = arith.negf %316 : vector<2x128xf32>
    %318 = math.exp %317 : vector<2x128xf32>
    %cst_108 = arith.constant 1.000000e+00 : f32
    %319 = vector.broadcast %cst_108 : f32 to vector<2x128xf32>
    %320 = arith.addf %319, %318 : vector<2x128xf32>
    %321 = arith.divf %319, %320 : vector<2x128xf32>
    %322 = vector.extract_strided_slice %321 {offsets = [0, 0], sizes = [2, 32], strides = [1, 1]} : vector<2x128xf32> to vector<2x32xf32>
    %323 = vector.extract_strided_slice %321 {offsets = [0, 32], sizes = [2, 32], strides = [1, 1]} : vector<2x128xf32> to vector<2x32xf32>
    %324 = vector.extract_strided_slice %321 {offsets = [0, 96], sizes = [2, 32], strides = [1, 1]} : vector<2x128xf32> to vector<2x32xf32>
    %325 = vector.extract_strided_slice %316 {offsets = [0, 64], sizes = [2, 32], strides = [1, 1]} : vector<2x128xf32> to vector<2x32xf32>
    %326 = math.tanh %325 : vector<2x32xf32>
    %327 = arith.mulf %323, %305 : vector<2x32xf32>
    %328 = arith.mulf %322, %326 : vector<2x32xf32>
    %329 = arith.addf %327, %328 : vector<2x32xf32>
    %330 = math.tanh %329 : vector<2x32xf32>
    %331 = arith.mulf %324, %330 : vector<2x32xf32>
    %332 = arith.index_cast %c4_i32_104 : i32 to index
    %c0_109 = arith.constant 0 : index
    %c0_110 = arith.constant 0 : index
    %333 = vector.load %arg7[%332, %c0_109, %c0_110] : memref<8x2x32xf32, #tpu.memory_space<vmem>>, vector<1x2x32xf32>
    %334 = vector.shape_cast %333 : vector<1x2x32xf32> to vector<2x32xf32>
    %335 = vector.shape_cast %331 : vector<2x32xf32> to vector<1x2x32xf32>
    tpu.vector_store %arg7[%332, %c0_109, %c0_110], %335 {strides = array<i32>} : memref<8x2x32xf32, #tpu.memory_space<vmem>>, vector<1x2x32xf32>,
    %c5_i32_111 = arith.constant 5 : i32
    %336 = arith.index_cast %c5_i32_111 : i32 to index
    %c0_112 = arith.constant 0 : index
    %c0_113 = arith.constant 0 : index
    %337 = vector.load %arg9[%336, %c0_112, %c0_113] : memref<8x2x128xf32, #tpu.memory_space<vmem>>, vector<1x2x128xf32>
    %338 = vector.shape_cast %337 : vector<1x2x128xf32> to vector<2x128xf32>
    %cst_114 = arith.constant dense<0.000000e+00> : vector<2x128xf32>
    %339 = tpu.matmul %331, %213, %cst_114 {dimension_numbers = #tpu.dot_dimension_numbers<[1], [0], [0], [1], [0, 0, 1, 1], [], []>} : vector<2x32xf32>, vector<32x128xf32>, vector<2x128xf32> -> vector<2x128xf32>
    %340 = arith.addf %338, %339 : vector<2x128xf32>
    %341 = arith.negf %340 : vector<2x128xf32>
    %342 = math.exp %341 : vector<2x128xf32>
    %cst_115 = arith.constant 1.000000e+00 : f32
    %343 = vector.broadcast %cst_115 : f32 to vector<2x128xf32>
    %344 = arith.addf %343, %342 : vector<2x128xf32>
    %345 = arith.divf %343, %344 : vector<2x128xf32>
    %346 = vector.extract_strided_slice %345 {offsets = [0, 0], sizes = [2, 32], strides = [1, 1]} : vector<2x128xf32> to vector<2x32xf32>
    %347 = vector.extract_strided_slice %345 {offsets = [0, 32], sizes = [2, 32], strides = [1, 1]} : vector<2x128xf32> to vector<2x32xf32>
    %348 = vector.extract_strided_slice %345 {offsets = [0, 96], sizes = [2, 32], strides = [1, 1]} : vector<2x128xf32> to vector<2x32xf32>
    %349 = vector.extract_strided_slice %340 {offsets = [0, 64], sizes = [2, 32], strides = [1, 1]} : vector<2x128xf32> to vector<2x32xf32>
    %350 = math.tanh %349 : vector<2x32xf32>
    %351 = arith.mulf %347, %329 : vector<2x32xf32>
    %352 = arith.mulf %346, %350 : vector<2x32xf32>
    %353 = arith.addf %351, %352 : vector<2x32xf32>
    %354 = math.tanh %353 : vector<2x32xf32>
    %355 = arith.mulf %348, %354 : vector<2x32xf32>
    %356 = arith.index_cast %c5_i32_111 : i32 to index
    %c0_116 = arith.constant 0 : index
    %c0_117 = arith.constant 0 : index
    %357 = vector.load %arg7[%356, %c0_116, %c0_117] : memref<8x2x32xf32, #tpu.memory_space<vmem>>, vector<1x2x32xf32>
    %358 = vector.shape_cast %357 : vector<1x2x32xf32> to vector<2x32xf32>
    %359 = vector.shape_cast %355 : vector<2x32xf32> to vector<1x2x32xf32>
    tpu.vector_store %arg7[%356, %c0_116, %c0_117], %359 {strides = array<i32>} : memref<8x2x32xf32, #tpu.memory_space<vmem>>, vector<1x2x32xf32>,
    %c6_i32_118 = arith.constant 6 : i32
    %360 = arith.index_cast %c6_i32_118 : i32 to index
    %c0_119 = arith.constant 0 : index
    %c0_120 = arith.constant 0 : index
    %361 = vector.load %arg9[%360, %c0_119, %c0_120] : memref<8x2x128xf32, #tpu.memory_space<vmem>>, vector<1x2x128xf32>
    %362 = vector.shape_cast %361 : vector<1x2x128xf32> to vector<2x128xf32>
    %cst_121 = arith.constant dense<0.000000e+00> : vector<2x128xf32>
    %363 = tpu.matmul %355, %213, %cst_121 {dimension_numbers = #tpu.dot_dimension_numbers<[1], [0], [0], [1], [0, 0, 1, 1], [], []>} : vector<2x32xf32>, vector<32x128xf32>, vector<2x128xf32> -> vector<2x128xf32>
    %364 = arith.addf %362, %363 : vector<2x128xf32>
    %365 = arith.negf %364 : vector<2x128xf32>
    %366 = math.exp %365 : vector<2x128xf32>
    %cst_122 = arith.constant 1.000000e+00 : f32
    %367 = vector.broadcast %cst_122 : f32 to vector<2x128xf32>
    %368 = arith.addf %367, %366 : vector<2x128xf32>
    %369 = arith.divf %367, %368 : vector<2x128xf32>
    %370 = vector.extract_strided_slice %369 {offsets = [0, 0], sizes = [2, 32], strides = [1, 1]} : vector<2x128xf32> to vector<2x32xf32>
    %371 = vector.extract_strided_slice %369 {offsets = [0, 32], sizes = [2, 32], strides = [1, 1]} : vector<2x128xf32> to vector<2x32xf32>
    %372 = vector.extract_strided_slice %369 {offsets = [0, 96], sizes = [2, 32], strides = [1, 1]} : vector<2x128xf32> to vector<2x32xf32>
    %373 = vector.extract_strided_slice %364 {offsets = [0, 64], sizes = [2, 32], strides = [1, 1]} : vector<2x128xf32> to vector<2x32xf32>
    %374 = math.tanh %373 : vector<2x32xf32>
    %375 = arith.mulf %371, %353 : vector<2x32xf32>
    %376 = arith.mulf %370, %374 : vector<2x32xf32>
    %377 = arith.addf %375, %376 : vector<2x32xf32>
    %378 = math.tanh %377 : vector<2x32xf32>
    %379 = arith.mulf %372, %378 : vector<2x32xf32>
    %380 = arith.index_cast %c6_i32_118 : i32 to index
    %c0_123 = arith.constant 0 : index
    %c0_124 = arith.constant 0 : index
    %381 = vector.load %arg7[%380, %c0_123, %c0_124] : memref<8x2x32xf32, #tpu.memory_space<vmem>>, vector<1x2x32xf32>
    %382 = vector.shape_cast %381 : vector<1x2x32xf32> to vector<2x32xf32>
    %383 = vector.shape_cast %379 : vector<2x32xf32> to vector<1x2x32xf32>
    tpu.vector_store %arg7[%380, %c0_123, %c0_124], %383 {strides = array<i32>} : memref<8x2x32xf32, #tpu.memory_space<vmem>>, vector<1x2x32xf32>,
    %c7_i32_125 = arith.constant 7 : i32
    %384 = arith.index_cast %c7_i32_125 : i32 to index
    %c0_126 = arith.constant 0 : index
    %c0_127 = arith.constant 0 : index
    %385 = vector.load %arg9[%384, %c0_126, %c0_127] : memref<8x2x128xf32, #tpu.memory_space<vmem>>, vector<1x2x128xf32>
    %386 = vector.shape_cast %385 : vector<1x2x128xf32> to vector<2x128xf32>
    %cst_128 = arith.constant dense<0.000000e+00> : vector<2x128xf32>
    %387 = tpu.matmul %379, %213, %cst_128 {dimension_numbers = #tpu.dot_dimension_numbers<[1], [0], [0], [1], [0, 0, 1, 1], [], []>} : vector<2x32xf32>, vector<32x128xf32>, vector<2x128xf32> -> vector<2x128xf32>
    %388 = arith.addf %386, %387 : vector<2x128xf32>
    %389 = arith.negf %388 : vector<2x128xf32>
    %390 = math.exp %389 : vector<2x128xf32>
    %cst_129 = arith.constant 1.000000e+00 : f32
    %391 = vector.broadcast %cst_129 : f32 to vector<2x128xf32>
    %392 = arith.addf %391, %390 : vector<2x128xf32>
    %393 = arith.divf %391, %392 : vector<2x128xf32>
    %394 = vector.extract_strided_slice %393 {offsets = [0, 0], sizes = [2, 32], strides = [1, 1]} : vector<2x128xf32> to vector<2x32xf32>
    %395 = vector.extract_strided_slice %393 {offsets = [0, 32], sizes = [2, 32], strides = [1, 1]} : vector<2x128xf32> to vector<2x32xf32>
    %396 = vector.extract_strided_slice %393 {offsets = [0, 96], sizes = [2, 32], strides = [1, 1]} : vector<2x128xf32> to vector<2x32xf32>
    %397 = vector.extract_strided_slice %388 {offsets = [0, 64], sizes = [2, 32], strides = [1, 1]} : vector<2x128xf32> to vector<2x32xf32>
    %398 = math.tanh %397 : vector<2x32xf32>
    %399 = arith.mulf %395, %377 : vector<2x32xf32>
    %400 = arith.mulf %394, %398 : vector<2x32xf32>
    %401 = arith.addf %399, %400 : vector<2x32xf32>
    %402 = math.tanh %401 : vector<2x32xf32>
    %403 = arith.mulf %396, %402 : vector<2x32xf32>
    %404 = arith.index_cast %c7_i32_125 : i32 to index
    %c0_130 = arith.constant 0 : index
    %c0_131 = arith.constant 0 : index
    %405 = vector.load %arg7[%404, %c0_130, %c0_131] : memref<8x2x32xf32, #tpu.memory_space<vmem>>, vector<1x2x32xf32>
    %406 = vector.shape_cast %405 : vector<1x2x32xf32> to vector<2x32xf32>
    %407 = vector.shape_cast %403 : vector<2x32xf32> to vector<1x2x32xf32>
    tpu.vector_store %arg7[%404, %c0_130, %c0_131], %407 {strides = array<i32>} : memref<8x2x32xf32, #tpu.memory_space<vmem>>, vector<1x2x32xf32>,
    %c8_i32_132 = arith.constant 8 : i32
    return
  }
}

</mosaic_0001>

<llo_original>
// kernel: tpu_custom_call.1
$region0: #{tpu_custom_call.1}
  #allocation0 [shape = 'u32[]', space=smem, size = 0x4, offset = 0x4, fixed_abs, tag = 'smem constant byte address 0x4 - core index']
  #allocation1 [shape = 'u32[72,128]{1,0:T(1,128)}', space=vmem, size = 0x9000, scoped, tag = 'internal scratch']
  #allocation2 [shape = 'f32[8,2,32]{2,1,0:T(2,128)}', space=vmem, size = 0x2000, scoped, tag = 'scratch operand']
  #allocation3 [shape = 'f32[8,2,128]{2,1,0:T(2,128)}', space=vmem, size = 0x2000, scoped, tag = 'scratch operand']
  %s0 = inlined_call_operand.hbm [shape: f32[8,2,32], index: 0, kind: input, shape index: {}]
  %s1 = inlined_call_operand.hbm [shape: f32[32,128], index: 1, kind: input, shape index: {}]
  %s2 = inlined_call_operand.hbm [shape: f32[32,128], index: 2, kind: input, shape index: {}]
  %s3 = inlined_call_operand.vmem [shape: f32[1,128], index: 3, kind: input, shape index: {}]
  %s4 = inlined_call_operand.hbm [shape: f32[32,128], index: 4, kind: input, shape index: {}]
  %s5 = inlined_call_operand.hbm [shape: f32[32,128], index: 5, kind: input, shape index: {}]
  %s6 = inlined_call_operand.vmem [shape: f32[1,128], index: 6, kind: input, shape index: {}]
  %s7 = inlined_call_operand.hbm [shape: f32[8,2,32], index: 7, kind: output, shape index: {}]
  %s8 = sld [smem:[#allocation0]]
  $region58: #{tpu_custom_call.1} parent=0
    _
  %s10 = ssub.s32 1, %s8
  %s11 = scalar_select 0, %s10, %s8
  $region1: #{tpu_custom_call.1} parent=0
    #allocation4 [shape = 'u8[8192]{0}', space=vmem, size = 0x2000, scoped, tag = 'input window, operand 0, single buffered']
    #allocation5 [shape = 's32[1]{0}', space=sflag, size = 0x4, scoped, tag = 'scoped memory for tpu_custom_call.1']
    #allocation6 [shape = 's32[1]{0}', space=sflag, size = 0x4, scoped, tag = 'scoped memory for tpu_custom_call.1']
    #allocation7 [shape = 'u8[16384]{0}', space=vmem, size = 0x4000, scoped, tag = 'input window, operand 1, single buffered']
    #allocation8 [shape = 's32[1]{0}', space=sflag, size = 0x4, scoped, tag = 'scoped memory for tpu_custom_call.1']
    #allocation9 [shape = 'u8[16384]{0}', space=vmem, size = 0x4000, scoped, tag = 'input window, operand 2, single buffered']
    #allocation10 [shape = 'u8[16384]{0}', space=vmem, size = 0x4000, scoped, tag = 'input window, operand 4, single buffered']
    #allocation11 [shape = 's32[1]{0}', space=sflag, size = 0x4, scoped, tag = 'scoped memory for tpu_custom_call.1']
    #allocation12 [shape = 'u8[16384]{0}', space=vmem, size = 0x4000, scoped, tag = 'input window, operand 5, single buffered']
    #allocation13 [shape = 'u8[8192]{0}', space=vmem, size = 0x2000, scoped, tag = 'output window, operand 0, single buffered']
    %12 = vsyncpa [#allocation5], 0
    %13 = vsyncpa [#allocation8], 0
    %14 = vsyncpa [#allocation11], 0
    %15 = vsyncpa [#allocation6], 0
    // Predicated region
    $region2: #{tpu_custom_call.1} parent=1 // pred_check
      _
    $region3: #{tpu_custom_call.1} parent=1 // pred_check_branch
      %17 = sbr.rel (0) target = $region5
    $region4: #{tpu_custom_call.1} parent=1 // pred_region
      %19 = vsyncadd [#allocation5], 0
      %s20 = sshll.u32 %s0, 4
      %s21 = int_to_ptr.hbm [resolvable:$true] %s20
      %s22 = sshll.u32 [#allocation4], 4
      %s23 = int_to_ptr.vmem [resolvable:$true] %s22
      %28 = dma.hbm_to_vmem [thread:$0]  %s21, 256, %s23, [#allocation5], 32, 32, 2
    $region5: #{tpu_custom_call.1} parent=1 // pred_fallthru
      _
    // Predicated region
    $region6: #{tpu_custom_call.1} parent=1 // pred_check
      _
    $region7: #{tpu_custom_call.1} parent=1 // pred_check_branch
      %30 = sbr.rel (0) target = $region9
    $region8: #{tpu_custom_call.1} parent=1 // pred_region
      %32 = vsyncadd [#allocation8], 0
      %s33 = sshll.u32 %s1, 4
      %s34 = int_to_ptr.hbm [resolvable:$true] %s33
      %s35 = sshll.u32 [#allocation7], 4
      %s36 = int_to_ptr.vmem [resolvable:$true] %s35
      %41 = dma.hbm_to_vmem [thread:$0]  %s34, 512, %s36, [#allocation8], 128, 128, 8
    $region9: #{tpu_custom_call.1} parent=1 // pred_fallthru
      _
    // Predicated region
    $region10: #{tpu_custom_call.1} parent=1 // pred_check
      _
    $region11: #{tpu_custom_call.1} parent=1 // pred_check_branch
      %43 = sbr.rel (0) target = $region13
    $region12: #{tpu_custom_call.1} parent=1 // pred_region
      %45 = vsyncadd [#allocation8], 0
      %s46 = sshll.u32 %s2, 4
      %s47 = int_to_ptr.hbm [resolvable:$true] %s46
      %s48 = sshll.u32 [#allocation9], 4
      %s49 = int_to_ptr.vmem [resolvable:$true] %s48
      %54 = dma.hbm_to_vmem [thread:$0]  %s47, 512, %s49, [#allocation8], 128, 128, 8
    $region13: #{tpu_custom_call.1} parent=1 // pred_fallthru
      _
    // Predicated region
    $region14: #{tpu_custom_call.1} parent=1 // pred_check
      _
    $region15: #{tpu_custom_call.1} parent=1 // pred_check_branch
      %56 = sbr.rel (0) target = $region17
    $region16: #{tpu_custom_call.1} parent=1 // pred_region
      _
    $region17: #{tpu_custom_call.1} parent=1 // pred_fallthru
      _
    // Predicated region
    $region18: #{tpu_custom_call.1} parent=1 // pred_check
      _
    $region19: #{tpu_custom_call.1} parent=1 // pred_check_branch
      %58 = sbr.rel (0) target = $region21
    $region20: #{tpu_custom_call.1} parent=1 // pred_region
      %60 = vsyncadd [#allocation11], 0
      %s61 = sshll.u32 %s4, 4
      %s62 = int_to_ptr.hbm [resolvable:$true] %s61
      %s63 = sshll.u32 [#allocation10], 4
      %s64 = int_to_ptr.vmem [resolvable:$true] %s63
      %69 = dma.hbm_to_vmem [thread:$0]  %s62, 512, %s64, [#allocation11], 128, 128, 8
    $region21: #{tpu_custom_call.1} parent=1 // pred_fallthru
      _
    // Predicated region
    $region22: #{tpu_custom_call.1} parent=1 // pred_check
      _
    $region23: #{tpu_custom_call.1} parent=1 // pred_check_branch
      %71 = sbr.rel (0) target = $region25
    $region24: #{tpu_custom_call.1} parent=1 // pred_region
      %73 = vsyncadd [#allocation11], 0
      %s74 = sshll.u32 %s5, 4
      %s75 = int_to_ptr.hbm [resolvable:$true] %s74
      %s76 = sshll.u32 [#allocation12], 4
      %s77 = int_to_ptr.vmem [resolvable:$true] %s76
      %82 = dma.hbm_to_vmem [thread:$0]  %s75, 512, %s77, [#allocation11], 128, 128, 8
    $region25: #{tpu_custom_call.1} parent=1 // pred_fallthru
      _
    // Predicated region
    $region26: #{tpu_custom_call.1} parent=1 // pred_check
      _
    $region27: #{tpu_custom_call.1} parent=1 // pred_check_branch
      %84 = sbr.rel (0) target = $region29
    $region28: #{tpu_custom_call.1} parent=1 // pred_region
      _
    $region29: #{tpu_custom_call.1} parent=1 // pred_fallthru
      _
    // Predicated region
    $region30: #{tpu_custom_call.1} parent=1 // pred_check
      _
    $region31: #{tpu_custom_call.1} parent=1 // pred_check_branch
      %86 = sbr.rel (0) target = $region33
    $region32: #{tpu_custom_call.1} parent=1 // pred_region
      %88 = dma.done [#allocation5], 256
    $region33: #{tpu_custom_call.1} parent=1 // pred_fallthru
      _
    // Predicated region
    $region34: #{tpu_custom_call.1} parent=1 // pred_check
      _
    $region35: #{tpu_custom_call.1} parent=1 // pred_check_branch
      %90 = sbr.rel (0) target = $region37
    $region36: #{tpu_custom_call.1} parent=1 // pred_region
      %92 = dma.done [#allocation8], 512
    $region37: #{tpu_custom_call.1} parent=1 // pred_fallthru
      _
    // Predicated region
    $region38: #{tpu_custom_call.1} parent=1 // pred_check
      _
    $region39: #{tpu_custom_call.1} parent=1 // pred_check_branch
      %94 = sbr.rel (0) target = $region41
    $region40: #{tpu_custom_call.1} parent=1 // pred_region
      %96 = dma.done [#allocation8], 512
    $region41: #{tpu_custom_call.1} parent=1 // pred_fallthru
      _
    // Predicated region
    $region42: #{tpu_custom_call.1} parent=1 // pred_check
      _
    $region43: #{tpu_custom_call.1} parent=1 // pred_check_branch
      %98 = sbr.rel (0) target = $region45
    $region44: #{tpu_custom_call.1} parent=1 // pred_region
      %100 = dma.done [#allocation11], 512
    $region45: #{tpu_custom_call.1} parent=1 // pred_fallthru
      _
    // Predicated region
    $region46: #{tpu_custom_call.1} parent=1 // pred_check
      _
    $region47: #{tpu_custom_call.1} parent=1 // pred_check_branch
      %102 = sbr.rel (0) target = $region49
    $region48: #{tpu_custom_call.1} parent=1 // pred_region
      %104 = dma.done [#allocation11], 512
    $region49: #{tpu_custom_call.1} parent=1 // pred_fallthru
      _
    %v105 = vld [vmem:[#allocation4] sm:$0x3]
    %v106 = vld [vmem:[#allocation4 + $0x2] sm:$0x3]
    %v107 = vld [vmem:[#allocation4 + $0x4] sm:$0x3]
    %v108 = vld [vmem:[#allocation4 + $0x6] sm:$0x3]
    %v109 = vld [vmem:[#allocation4 + $0x8] sm:$0x3]
    %v110 = vld [vmem:[#allocation4 + $0xa] sm:$0x3]
    %v111 = vld [vmem:[#allocation4 + $0xc] sm:$0x3]
    %v112 = vld [vmem:[#allocation4 + $0xe] sm:$0x3]
    %v113 = vld [vmem:[#allocation7] sm:$0xff]
    %v114 = vld [vmem:[#allocation7 + $0x8] sm:$0xff]
    %v115 = vld [vmem:[#allocation7 + $0x10] sm:$0xff]
    %v116 = vld [vmem:[#allocation7 + $0x18] sm:$0xff]
    %v117 = vld [vmem:[%s3] sm:$0x1]
    %v119 = vperm.slane %v117, 0
    %129 = vst [vmem:[#allocation1] ss:$4 sm:$0xff] %v105
    %s130 = scalar_lea.vmem [#allocation1], 1
    %131 = vst [vmem:[%s130] ss:$4 sm:$0xff] %v106
    %s132 = scalar_lea.vmem [#allocation1], 2
    %133 = vst [vmem:[%s132] ss:$4 sm:$0xff] %v107
    %s134 = scalar_lea.vmem [#allocation1], 3
    %135 = vst [vmem:[%s134] ss:$4 sm:$0xff] %v108
    %s136 = scalar_lea.vmem [#allocation1], 32
    %137 = vst [vmem:[%s136] ss:$4 sm:$0xff] %v109
    %s138 = scalar_lea.vmem [#allocation1], 33
    %139 = vst [vmem:[%s138] ss:$4 sm:$0xff] %v110
    %s140 = scalar_lea.vmem [#allocation1], 34
    %141 = vst [vmem:[%s140] ss:$4 sm:$0xff] %v111
    %s142 = scalar_lea.vmem [#allocation1], 35
    %143 = vst [vmem:[%s142] ss:$4 sm:$0xff] %v112
    %v144 = vld.sshfl [vmem:[#allocation1] sm:$0xff pattern:$0x73625140]
    %v145 = vld.sshfl [vmem:[#allocation1 + $0x20] sm:$0xff pattern:$0x73625140]
    %vm146 = vcmask 261120
    %v147 = vsel %vm146, %v144, 0
    %v149 = vsel %vm146, %v145, 0
    %151 = vmatpush.msra.mxu0 0.0
    %152 = vmatpush.msra.mxu0 0.0
    %153 = vmatpush.msra.mxu0 0.0
    %154 = vmatpush.msra.mxu0 0.0
    %155 = vmatpush.msra.mxu0 0.0
    %156 = vmatpush.msra.mxu0 0.0
    %157 = vmatpush.msra.mxu0 0.0
    %158 = vmatpush.msra.mxu0 0.0
    %159 = vmatpush.msra.mxu0 0.0
    %160 = vmatpush.msra.mxu0 0.0
    %161 = vmatpush.msra.mxu0 0.0
    %162 = vmatpush.msra.mxu0 0.0
    %163 = vmatpush.msra.mxu0 %v116
    %164 = vmatpush.msra.mxu0 %v115
    %165 = vmatpush.msra.mxu0 %v114
    %166 = vmatpush.msra.mxu0 %v113
    %167 = vmatmul.f32.gmra.mxu0 %v147
    %v168 = vpop.f32.mrf.mxu0
    %v169 = vadd.f32 %v119, %v168
    %170 = vmatmul.f32.gmra.mxu0 %v149
    %v171 = vpop.f32.mrf.mxu0
    %v172 = vadd.f32 %v119, %v171
    %173 = vdwg.mxu0
    %v176 = vrot.slane %v169, 2
    %v177 = vrot.slane %v169, 4
    %v178 = vrot.slane %v169, 6
    %v179 = vrot.slane %v172, 2
    %v180 = vrot.slane %v172, 4
    %v181 = vrot.slane %v172, 6
    %188 = vst [vmem:[#allocation3] sm:$0x3] %v169
    %189 = vst [vmem:[#allocation3 + $0x2] sm:$0x3] %v176
    %190 = vst [vmem:[#allocation3 + $0x4] sm:$0x3] %v177
    %191 = vst [vmem:[#allocation3 + $0x6] sm:$0x3] %v178
    %192 = vst [vmem:[#allocation3 + $0x8] sm:$0x3] %v172
    %193 = vst [vmem:[#allocation3 + $0xa] sm:$0x3] %v179
    %194 = vst [vmem:[#allocation3 + $0xc] sm:$0x3] %v180
    %195 = vst [vmem:[#allocation3 + $0xe] sm:$0x3] %v181
    %v196 = vld [vmem:[#allocation9] sm:$0xff]
    %v197 = vld [vmem:[#allocation9 + $0x8] sm:$0xff]
    %v198 = vld [vmem:[#allocation9 + $0x10] sm:$0xff]
    %v199 = vld [vmem:[#allocation9 + $0x18] sm:$0xff]
    %v200 = vld [vmem:[#allocation3] sm:$0x3]
    %v202 = vsel %vm146, 0.0, 0
    %204 = vmatpush.msra.mxu0 0.0
    %205 = vmatpush.msra.mxu0 0.0
    %206 = vmatpush.msra.mxu0 0.0
    %207 = vmatpush.msra.mxu0 0.0
    %208 = vmatpush.msra.mxu0 0.0
    %209 = vmatpush.msra.mxu0 0.0
    %210 = vmatpush.msra.mxu0 0.0
    %211 = vmatpush.msra.mxu0 0.0
    %212 = vmatpush.msra.mxu0 0.0
    %213 = vmatpush.msra.mxu0 0.0
    %214 = vmatpush.msra.mxu0 0.0
    %215 = vmatpush.msra.mxu0 0.0
    %216 = vmatpush.msra.mxu0 %v199
    %217 = vmatpush.msra.mxu0 %v198
    %218 = vmatpush.msra.mxu0 %v197
    %219 = vmatpush.msra.mxu0 %v196
    %220 = vmatmul.f32.gmra.mxu0 %v202
    %v221 = vpop.f32.mrf.mxu0
    %v222 = vadd.f32 0.0, %v221
    %223 = vdwg.mxu0
    %v224 = vadd.f32 %v200, %v222
    %v225 = vxor.u32 %v224, 2147483648
    %v226 = vmul.f32 %v225, 1.442695
    %v227 = vpow.pop %v226
    %v228 = vadd.f32 %v227, 1.0
    %v229 = vrcp.pop %v228
    %v230 = vmul.f32 %v228, %v229
    %v231 = vsub.f32 1.0, %v230
    %v232 = vmul.f32 %v229, %v231
    %v233 = vadd.f32 %v229, %v232
    %vm234 = vweird.f32 %v228
    %vm235 = vweird.f32 %v229
    %vm236 = vmor %vm234, %vm235
    %v237 = vsel %vm236, %v229, %v233
    %v238 = vand.u32 2147483647, %v228
    %vm239 = vcmp.eq.f32.partialorder %v238, 8.507059e+37
    %v240 = vand.u32 %v228, 2147483648
    %v241 = vor.u32 1.1754944e-38, %v240
    %v242 = vsel %vm239, %v241, %v237
    %v243 = vmul.f32 1.0, %v242
    %v244 = vtanh.pop %v224
    %v245 = vmul.f32 %v243, 0.0
    %247 = vrot.lane.b32.xlu0 %v244, 64
    %v248 = vpop.permute.xlu0 %247
    %v250 = vmul.f32 %v243, %v248
    %252 = vrot.lane.b32.xlu0 %v250, 32
    %v253 = vpop.permute.xlu0 %252
    %v255 = vadd.f32 %v245, %v253
    %v256 = vtanh.pop %v255
    %258 = vrot.lane.b32.xlu0 %v256, 64
    %v259 = vpop.permute.xlu0 %258
    %v261 = vmul.f32 %v243, %v259
    %263 = vrot.lane.b32.xlu0 %v261, 32
    %v264 = vpop.permute.xlu0 %263
    %vm266 = vcmask 254976
    %267 = vst.msk [vmem:[#allocation2] sm:$0x3] %vm266, %v264
    %s268 = scalar_lea.vmem [#allocation3], 2
    %v269 = vld [vmem:[%s268] sm:$0x3]
    %v270 = vsel %vm146, %v264, 0
    %272 = vmatpush.msra.mxu0 0.0
    %273 = vmatpush.msra.mxu0 0.0
    %274 = vmatpush.msra.mxu0 0.0
    %275 = vmatpush.msra.mxu0 0.0
    %276 = vmatpush.msra.mxu0 0.0
    %277 = vmatpush.msra.mxu0 0.0
    %278 = vmatpush.msra.mxu0 0.0
    %279 = vmatpush.msra.mxu0 0.0
    %280 = vmatpush.msra.mxu0 0.0
    %281 = vmatpush.msra.mxu0 0.0
    %282 = vmatpush.msra.mxu0 0.0
    %283 = vmatpush.msra.mxu0 0.0
    %284 = vmatpush.msra.mxu0 %v199
    %285 = vmatpush.msra.mxu0 %v198
    %286 = vmatpush.msra.mxu0 %v197
    %287 = vmatpush.msra.mxu0 %v196
    %288 = vmatmul.f32.gmra.mxu0 %v270
    %v289 = vpop.f32.mrf.mxu0
    %v290 = vadd.f32 0.0, %v289
    %291 = vdwg.mxu0
    %v292 = vadd.f32 %v269, %v290
    %v293 = vxor.u32 %v292, 2147483648
    %v294 = vmul.f32 %v293, 1.442695
    %v295 = vpow.pop %v294
    %v296 = vadd.f32 %v295, 1.0
    %v297 = vrcp.pop %v296
    %v298 = vmul.f32 %v296, %v297
    %v299 = vsub.f32 1.0, %v298
    %v300 = vmul.f32 %v297, %v299
    %v301 = vadd.f32 %v297, %v300
    %vm302 = vweird.f32 %v296
    %vm303 = vweird.f32 %v297
    %vm304 = vmor %vm302, %vm303
    %v305 = vsel %vm304, %v297, %v301
    %v306 = vand.u32 2147483647, %v296
    %vm307 = vcmp.eq.f32.partialorder %v306, 8.507059e+37
    %v308 = vand.u32 %v296, 2147483648
    %v309 = vor.u32 1.1754944e-38, %v308
    %v310 = vsel %vm307, %v309, %v305
    %v311 = vmul.f32 1.0, %v310
    %v312 = vtanh.pop %v292
    %v313 = vmul.f32 %v311, %v255
    %315 = vrot.lane.b32.xlu0 %v312, 64
    %v316 = vpop.permute.xlu0 %315
    %v318 = vmul.f32 %v311, %v316
    %320 = vrot.lane.b32.xlu0 %v318, 32
    %v321 = vpop.permute.xlu0 %320
    %v323 = vadd.f32 %v313, %v321
    %v324 = vtanh.pop %v323
    %326 = vrot.lane.b32.xlu0 %v324, 64
    %v327 = vpop.permute.xlu0 %326
    %v329 = vmul.f32 %v311, %v327
    %331 = vrot.lane.b32.xlu0 %v329, 32
    %v332 = vpop.permute.xlu0 %331
    %s334 = scalar_lea.vmem [#allocation2], 2
    %335 = vst.msk [vmem:[%s334] sm:$0x3] %vm266, %v332
    %s336 = scalar_lea.vmem [#allocation3], 4
    %v337 = vld [vmem:[%s336] sm:$0x3]
    %v338 = vsel %vm146, %v332, 0
    %340 = vmatpush.msra.mxu0 0.0
    %341 = vmatpush.msra.mxu0 0.0
    %342 = vmatpush.msra.mxu0 0.0
    %343 = vmatpush.msra.mxu0 0.0
    %344 = vmatpush.msra.mxu0 0.0
    %345 = vmatpush.msra.mxu0 0.0
    %346 = vmatpush.msra.mxu0 0.0
    %347 = vmatpush.msra.mxu0 0.0
    %348 = vmatpush.msra.mxu0 0.0
    %349 = vmatpush.msra.mxu0 0.0
    %350 = vmatpush.msra.mxu0 0.0
    %351 = vmatpush.msra.mxu0 0.0
    %352 = vmatpush.msra.mxu0 %v199
    %353 = vmatpush.msra.mxu0 %v198
    %354 = vmatpush.msra.mxu0 %v197
    %355 = vmatpush.msra.mxu0 %v196
    %356 = vmatmul.f32.gmra.mxu0 %v338
    %v357 = vpop.f32.mrf.mxu0
    %v358 = vadd.f32 0.0, %v357
    %359 = vdwg.mxu0
    %v360 = vadd.f32 %v337, %v358
    %v361 = vxor.u32 %v360, 2147483648
    %v362 = vmul.f32 %v361, 1.442695
    %v363 = vpow.pop %v362
    %v364 = vadd.f32 %v363, 1.0
    %v365 = vrcp.pop %v364
    %v366 = vmul.f32 %v364, %v365
    %v367 = vsub.f32 1.0, %v366
    %v368 = vmul.f32 %v365, %v367
    %v369 = vadd.f32 %v365, %v368
    %vm370 = vweird.f32 %v364
    %vm371 = vweird.f32 %v365
    %vm372 = vmor %vm370, %vm371
    %v373 = vsel %vm372, %v365, %v369
    %v374 = vand.u32 2147483647, %v364
    %vm375 = vcmp.eq.f32.partialorder %v374, 8.507059e+37
    %v376 = vand.u32 %v364, 2147483648
    %v377 = vor.u32 1.1754944e-38, %v376
    %v378 = vsel %vm375, %v377, %v373
    %v379 = vmul.f32 1.0, %v378
    %v380 = vtanh.pop %v360
    %v381 = vmul.f32 %v379, %v323
    %383 = vrot.lane.b32.xlu0 %v380, 64
    %v384 = vpop.permute.xlu0 %383
    %v386 = vmul.f32 %v379, %v384
    %388 = vrot.lane.b32.xlu0 %v386, 32
    %v389 = vpop.permute.xlu0 %388
    %v391 = vadd.f32 %v381, %v389
    %v392 = vtanh.pop %v391
    %394 = vrot.lane.b32.xlu0 %v392, 64
    %v395 = vpop.permute.xlu0 %394
    %v397 = vmul.f32 %v379, %v395
    %399 = vrot.lane.b32.xlu0 %v397, 32
    %v400 = vpop.permute.xlu0 %399
    %s402 = scalar_lea.vmem [#allocation2], 4
    %403 = vst.msk [vmem:[%s402] sm:$0x3] %vm266, %v400
    %s404 = scalar_lea.vmem [#allocation3], 6
    %v405 = vld [vmem:[%s404] sm:$0x3]
    %v406 = vsel %vm146, %v400, 0
    %408 = vmatpush.msra.mxu0 0.0
    %409 = vmatpush.msra.mxu0 0.0
    %410 = vmatpush.msra.mxu0 0.0
    %411 = vmatpush.msra.mxu0 0.0
    %412 = vmatpush.msra.mxu0 0.0
    %413 = vmatpush.msra.mxu0 0.0
    %414 = vmatpush.msra.mxu0 0.0
    %415 = vmatpush.msra.mxu0 0.0
    %416 = vmatpush.msra.mxu0 0.0
    %417 = vmatpush.msra.mxu0 0.0
    %418 = vmatpush.msra.mxu0 0.0
    %419 = vmatpush.msra.mxu0 0.0
    %420 = vmatpush.msra.mxu0 %v199
    %421 = vmatpush.msra.mxu0 %v198
    %422 = vmatpush.msra.mxu0 %v197
    %423 = vmatpush.msra.mxu0 %v196
    %424 = vmatmul.f32.gmra.mxu0 %v406
    %v425 = vpop.f32.mrf.mxu0
    %v426 = vadd.f32 0.0, %v425
    %427 = vdwg.mxu0
    %v428 = vadd.f32 %v405, %v426
    %v429 = vxor.u32 %v428, 2147483648
    %v430 = vmul.f32 %v429, 1.442695
    %v431 = vpow.pop %v430
    %v432 = vadd.f32 %v431, 1.0
    %v433 = vrcp.pop %v432
    %v434 = vmul.f32 %v432, %v433
    %v435 = vsub.f32 1.0, %v434
    %v436 = vmul.f32 %v433, %v435
    %v437 = vadd.f32 %v433, %v436
    %vm438 = vweird.f32 %v432
    %vm439 = vweird.f32 %v433
    %vm440 = vmor %vm438, %vm439
    %v441 = vsel %vm440, %v433, %v437
    %v442 = vand.u32 2147483647, %v432
    %vm443 = vcmp.eq.f32.partialorder %v442, 8.507059e+37
    %v444 = vand.u32 %v432, 2147483648
    %v445 = vor.u32 1.1754944e-38, %v444
    %v446 = vsel %vm443, %v445, %v441
    %v447 = vmul.f32 1.0, %v446
    %v448 = vtanh.pop %v428
    %v449 = vmul.f32 %v447, %v391
    %451 = vrot.lane.b32.xlu0 %v448, 64
    %v452 = vpop.permute.xlu0 %451
    %v454 = vmul.f32 %v447, %v452
    %456 = vrot.lane.b32.xlu0 %v454, 32
    %v457 = vpop.permute.xlu0 %456
    %v459 = vadd.f32 %v449, %v457
    %v460 = vtanh.pop %v459
    %462 = vrot.lane.b32.xlu0 %v460, 64
    %v463 = vpop.permute.xlu0 %462
    %v465 = vmul.f32 %v447, %v463
    %467 = vrot.lane.b32.xlu0 %v465, 32
    %v468 = vpop.permute.xlu0 %467
    %s470 = scalar_lea.vmem [#allocation2], 6
    %471 = vst.msk [vmem:[%s470] sm:$0x3] %vm266, %v468
    %s472 = scalar_lea.vmem [#allocation3], 8
    %v473 = vld [vmem:[%s472] sm:$0x3]
    %v474 = vsel %vm146, %v468, 0
    %476 = vmatpush.msra.mxu0 0.0
    %477 = vmatpush.msra.mxu0 0.0
    %478 = vmatpush.msra.mxu0 0.0
    %479 = vmatpush.msra.mxu0 0.0
    %480 = vmatpush.msra.mxu0 0.0
    %481 = vmatpush.msra.mxu0 0.0
    %482 = vmatpush.msra.mxu0 0.0
    %483 = vmatpush.msra.mxu0 0.0
    %484 = vmatpush.msra.mxu0 0.0
    %485 = vmatpush.msra.mxu0 0.0
    %486 = vmatpush.msra.mxu0 0.0
    %487 = vmatpush.msra.mxu0 0.0
    %488 = vmatpush.msra.mxu0 %v199
    %489 = vmatpush.msra.mxu0 %v198
    %490 = vmatpush.msra.mxu0 %v197
    %491 = vmatpush.msra.mxu0 %v196
    %492 = vmatmul.f32.gmra.mxu0 %v474
    %v493 = vpop.f32.mrf.mxu0
    %v494 = vadd.f32 0.0, %v493
    %495 = vdwg.mxu0
    %v496 = vadd.f32 %v473, %v494
    %v497 = vxor.u32 %v496, 2147483648
    %v498 = vmul.f32 %v497, 1.442695
    %v499 = vpow.pop %v498
    %v500 = vadd.f32 %v499, 1.0
    %v501 = vrcp.pop %v500
    %v502 = vmul.f32 %v500, %v501
    %v503 = vsub.f32 1.0, %v502
    %v504 = vmul.f32 %v501, %v503
    %v505 = vadd.f32 %v501, %v504
    %vm506 = vweird.f32 %v500
    %vm507 = vweird.f32 %v501
    %vm508 = vmor %vm506, %vm507
    %v509 = vsel %vm508, %v501, %v505
    %v510 = vand.u32 2147483647, %v500
    %vm511 = vcmp.eq.f32.partialorder %v510, 8.507059e+37
    %v512 = vand.u32 %v500, 2147483648
    %v513 = vor.u32 1.1754944e-38, %v512
    %v514 = vsel %vm511, %v513, %v509
    %v515 = vmul.f32 1.0, %v514
    %v516 = vtanh.pop %v496
    %v517 = vmul.f32 %v515, %v459
    %519 = vrot.lane.b32.xlu0 %v516, 64
    %v520 = vpop.permute.xlu0 %519
    %v522 = vmul.f32 %v515, %v520
    %524 = vrot.lane.b32.xlu0 %v522, 32
    %v525 = vpop.permute.xlu0 %524
    %v527 = vadd.f32 %v517, %v525
    %v528 = vtanh.pop %v527
    %530 = vrot.lane.b32.xlu0 %v528, 64
    %v531 = vpop.permute.xlu0 %530
    %v533 = vmul.f32 %v515, %v531
    %535 = vrot.lane.b32.xlu0 %v533, 32
    %v536 = vpop.permute.xlu0 %535
    %s538 = scalar_lea.vmem [#allocation2], 8
    %539 = vst.msk [vmem:[%s538] sm:$0x3] %vm266, %v536
    %s540 = scalar_lea.vmem [#allocation3], 10
    %v541 = vld [vmem:[%s540] sm:$0x3]
    %v542 = vsel %vm146, %v536, 0
    %544 = vmatpush.msra.mxu0 0.0
    %545 = vmatpush.msra.mxu0 0.0
    %546 = vmatpush.msra.mxu0 0.0
    %547 = vmatpush.msra.mxu0 0.0
    %548 = vmatpush.msra.mxu0 0.0
    %549 = vmatpush.msra.mxu0 0.0
    %550 = vmatpush.msra.mxu0 0.0
    %551 = vmatpush.msra.mxu0 0.0
    %552 = vmatpush.msra.mxu0 0.0
    %553 = vmatpush.msra.mxu0 0.0
    %554 = vmatpush.msra.mxu0 0.0
    %555 = vmatpush.msra.mxu0 0.0
    %556 = vmatpush.msra.mxu0 %v199
    %557 = vmatpush.msra.mxu0 %v198
    %558 = vmatpush.msra.mxu0 %v197
    %559 = vmatpush.msra.mxu0 %v196
    %560 = vmatmul.f32.gmra.mxu0 %v542
    %v561 = vpop.f32.mrf.mxu0
    %v562 = vadd.f32 0.0, %v561
    %563 = vdwg.mxu0
    %v564 = vadd.f32 %v541, %v562
    %v565 = vxor.u32 %v564, 2147483648
    %v566 = vmul.f32 %v565, 1.442695
    %v567 = vpow.pop %v566
    %v568 = vadd.f32 %v567, 1.0
    %v569 = vrcp.pop %v568
    %v570 = vmul.f32 %v568, %v569
    %v571 = vsub.f32 1.0, %v570
    %v572 = vmul.f32 %v569, %v571
    %v573 = vadd.f32 %v569, %v572
    %vm574 = vweird.f32 %v568
    %vm575 = vweird.f32 %v569
    %vm576 = vmor %vm574, %vm575
    %v577 = vsel %vm576, %v569, %v573
    %v578 = vand.u32 2147483647, %v568
    %vm579 = vcmp.eq.f32.partialorder %v578, 8.507059e+37
    %v580 = vand.u32 %v568, 2147483648
    %v581 = vor.u32 1.1754944e-38, %v580
    %v582 = vsel %vm579, %v581, %v577
    %v583 = vmul.f32 1.0, %v582
    %v584 = vtanh.pop %v564
    %v585 = vmul.f32 %v583, %v527
    %587 = vrot.lane.b32.xlu0 %v584, 64
    %v588 = vpop.permute.xlu0 %587
    %v590 = vmul.f32 %v583, %v588
    %592 = vrot.lane.b32.xlu0 %v590, 32
    %v593 = vpop.permute.xlu0 %592
    %v595 = vadd.f32 %v585, %v593
    %v596 = vtanh.pop %v595
    %598 = vrot.lane.b32.xlu0 %v596, 64
    %v599 = vpop.permute.xlu0 %598
    %v601 = vmul.f32 %v583, %v599
    %603 = vrot.lane.b32.xlu0 %v601, 32
    %v604 = vpop.permute.xlu0 %603
    %s606 = scalar_lea.vmem [#allocation2], 10
    %607 = vst.msk [vmem:[%s606] sm:$0x3] %vm266, %v604
    %s608 = scalar_lea.vmem [#allocation3], 12
    %v609 = vld [vmem:[%s608] sm:$0x3]
    %v610 = vsel %vm146, %v604, 0
    %612 = vmatpush.msra.mxu0 0.0
    %613 = vmatpush.msra.mxu0 0.0
    %614 = vmatpush.msra.mxu0 0.0
    %615 = vmatpush.msra.mxu0 0.0
    %616 = vmatpush.msra.mxu0 0.0
    %617 = vmatpush.msra.mxu0 0.0
    %618 = vmatpush.msra.mxu0 0.0
    %619 = vmatpush.msra.mxu0 0.0
    %620 = vmatpush.msra.mxu0 0.0
    %621 = vmatpush.msra.mxu0 0.0
    %622 = vmatpush.msra.mxu0 0.0
    %623 = vmatpush.msra.mxu0 0.0
    %624 = vmatpush.msra.mxu0 %v199
    %625 = vmatpush.msra.mxu0 %v198
    %626 = vmatpush.msra.mxu0 %v197
    %627 = vmatpush.msra.mxu0 %v196
    %628 = vmatmul.f32.gmra.mxu0 %v610
    %v629 = vpop.f32.mrf.mxu0
    %v630 = vadd.f32 0.0, %v629
    %631 = vdwg.mxu0
    %v632 = vadd.f32 %v609, %v630
    %v633 = vxor.u32 %v632, 2147483648
    %v634 = vmul.f32 %v633, 1.442695
    %v635 = vpow.pop %v634
    %v636 = vadd.f32 %v635, 1.0
    %v637 = vrcp.pop %v636
    %v638 = vmul.f32 %v636, %v637
    %v639 = vsub.f32 1.0, %v638
    %v640 = vmul.f32 %v637, %v639
    %v641 = vadd.f32 %v637, %v640
    %vm642 = vweird.f32 %v636
    %vm643 = vweird.f32 %v637
    %vm644 = vmor %vm642, %vm643
    %v645 = vsel %vm644, %v637, %v641
    %v646 = vand.u32 2147483647, %v636
    %vm647 = vcmp.eq.f32.partialorder %v646, 8.507059e+37
    %v648 = vand.u32 %v636, 2147483648
    %v649 = vor.u32 1.1754944e-38, %v648
    %v650 = vsel %vm647, %v649, %v645
    %v651 = vmul.f32 1.0, %v650
    %v652 = vtanh.pop %v632
    %v653 = vmul.f32 %v651, %v595
    %655 = vrot.lane.b32.xlu0 %v652, 64
    %v656 = vpop.permute.xlu0 %655
    %v658 = vmul.f32 %v651, %v656
    %660 = vrot.lane.b32.xlu0 %v658, 32
    %v661 = vpop.permute.xlu0 %660
    %v663 = vadd.f32 %v653, %v661
    %v664 = vtanh.pop %v663
    %666 = vrot.lane.b32.xlu0 %v664, 64
    %v667 = vpop.permute.xlu0 %666
    %v669 = vmul.f32 %v651, %v667
    %671 = vrot.lane.b32.xlu0 %v669, 32
    %v672 = vpop.permute.xlu0 %671
    %s674 = scalar_lea.vmem [#allocation2], 12
    %675 = vst.msk [vmem:[%s674] sm:$0x3] %vm266, %v672
    %s676 = scalar_lea.vmem [#allocation3], 14
    %v677 = vld [vmem:[%s676] sm:$0x3]
    %v678 = vsel %vm146, %v672, 0
    %680 = vmatpush.msra.mxu0 0.0
    %681 = vmatpush.msra.mxu0 0.0
    %682 = vmatpush.msra.mxu0 0.0
    %683 = vmatpush.msra.mxu0 0.0
    %684 = vmatpush.msra.mxu0 0.0
    %685 = vmatpush.msra.mxu0 0.0
    %686 = vmatpush.msra.mxu0 0.0
    %687 = vmatpush.msra.mxu0 0.0
    %688 = vmatpush.msra.mxu0 0.0
    %689 = vmatpush.msra.mxu0 0.0
    %690 = vmatpush.msra.mxu0 0.0
    %691 = vmatpush.msra.mxu0 0.0
    %692 = vmatpush.msra.mxu0 %v199
    %693 = vmatpush.msra.mxu0 %v198
    %694 = vmatpush.msra.mxu0 %v197
    %695 = vmatpush.msra.mxu0 %v196
    %696 = vmatmul.f32.gmra.mxu0 %v678
    %v697 = vpop.f32.mrf.mxu0
    %v698 = vadd.f32 0.0, %v697
    %699 = vdwg.mxu0
    %v700 = vadd.f32 %v677, %v698
    %v701 = vxor.u32 %v700, 2147483648
    %v702 = vmul.f32 %v701, 1.442695
    %v703 = vpow.pop %v702
    %v704 = vadd.f32 %v703, 1.0
    %v705 = vrcp.pop %v704
    %v706 = vmul.f32 %v704, %v705
    %v707 = vsub.f32 1.0, %v706
    %v708 = vmul.f32 %v705, %v707
    %v709 = vadd.f32 %v705, %v708
    %vm710 = vweird.f32 %v704
    %vm711 = vweird.f32 %v705
    %vm712 = vmor %vm710, %vm711
    %v713 = vsel %vm712, %v705, %v709
    %v714 = vand.u32 2147483647, %v704
    %vm715 = vcmp.eq.f32.partialorder %v714, 8.507059e+37
    %v716 = vand.u32 %v704, 2147483648
    %v717 = vor.u32 1.1754944e-38, %v716
    %v718 = vsel %vm715, %v717, %v713
    %v719 = vmul.f32 1.0, %v718
    %v720 = vtanh.pop %v700
    %v721 = vmul.f32 %v719, %v663
    %723 = vrot.lane.b32.xlu0 %v720, 64
    %v724 = vpop.permute.xlu0 %723
    %v726 = vmul.f32 %v719, %v724
    %728 = vrot.lane.b32.xlu0 %v726, 32
    %v729 = vpop.permute.xlu0 %728
    %v731 = vadd.f32 %v721, %v729
    %v732 = vtanh.pop %v731
    %734 = vrot.lane.b32.xlu0 %v732, 64
    %v735 = vpop.permute.xlu0 %734
    %v737 = vmul.f32 %v719, %v735
    %739 = vrot.lane.b32.xlu0 %v737, 32
    %v740 = vpop.permute.xlu0 %739
    %s742 = scalar_lea.vmem [#allocation2], 14
    %743 = vst.msk [vmem:[%s742] sm:$0x3] %vm266, %v740
    %v744 = vld [vmem:[#allocation2] sm:$0x3]
    %v745 = vld [vmem:[#allocation2 + $0x2] sm:$0x3]
    %v746 = vld [vmem:[#allocation2 + $0x4] sm:$0x3]
    %v747 = vld [vmem:[#allocation2 + $0x6] sm:$0x3]
    %v748 = vld [vmem:[#allocation2 + $0x8] sm:$0x3]
    %v749 = vld [vmem:[#allocation2 + $0xa] sm:$0x3]
    %v750 = vld [vmem:[#allocation2 + $0xc] sm:$0x3]
    %v751 = vld [vmem:[#allocation2 + $0xe] sm:$0x3]
    %v752 = vld [vmem:[#allocation10] sm:$0xff]
    %v753 = vld [vmem:[#allocation10 + $0x8] sm:$0xff]
    %v754 = vld [vmem:[#allocation10 + $0x10] sm:$0xff]
    %v755 = vld [vmem:[#allocation10 + $0x18] sm:$0xff]
    %v756 = vld [vmem:[%s6] sm:$0x1]
    %v758 = vperm.slane %v756, 0
    %768 = vst [vmem:[#allocation1] ss:$4 sm:$0xff] %v744
    %s769 = scalar_lea.vmem [#allocation1], 1
    %770 = vst [vmem:[%s769] ss:$4 sm:$0xff] %v745
    %s771 = scalar_lea.vmem [#allocation1], 2
    %772 = vst [vmem:[%s771] ss:$4 sm:$0xff] %v746
    %s773 = scalar_lea.vmem [#allocation1], 3
    %774 = vst [vmem:[%s773] ss:$4 sm:$0xff] %v747
    %s775 = scalar_lea.vmem [#allocation1], 32
    %776 = vst [vmem:[%s775] ss:$4 sm:$0xff] %v748
    %s777 = scalar_lea.vmem [#allocation1], 33
    %778 = vst [vmem:[%s777] ss:$4 sm:$0xff] %v749
    %s779 = scalar_lea.vmem [#allocation1], 34
    %780 = vst [vmem:[%s779] ss:$4 sm:$0xff] %v750
    %s781 = scalar_lea.vmem [#allocation1], 35
    %782 = vst [vmem:[%s781] ss:$4 sm:$0xff] %v751
    %v783 = vld.sshfl [vmem:[#allocation1] sm:$0xff pattern:$0x73625140]
    %v784 = vld.sshfl [vmem:[#allocation1 + $0x20] sm:$0xff pattern:$0x73625140]
    %v785 = vsel %vm146, %v783, 0
    %v787 = vsel %vm146, %v784, 0
    %789 = vmatpush.msra.mxu0 0.0
    %790 = vmatpush.msra.mxu0 0.0
    %791 = vmatpush.msra.mxu0 0.0
    %792 = vmatpush.msra.mxu0 0.0
    %793 = vmatpush.msra.mxu0 0.0
    %794 = vmatpush.msra.mxu0 0.0
    %795 = vmatpush.msra.mxu0 0.0
    %796 = vmatpush.msra.mxu0 0.0
    %797 = vmatpush.msra.mxu0 0.0
    %798 = vmatpush.msra.mxu0 0.0
    %799 = vmatpush.msra.mxu0 0.0
    %800 = vmatpush.msra.mxu0 0.0
    %801 = vmatpush.msra.mxu0 %v755
    %802 = vmatpush.msra.mxu0 %v754
    %803 = vmatpush.msra.mxu0 %v753
    %804 = vmatpush.msra.mxu0 %v752
    %805 = vmatmul.f32.gmra.mxu0 %v785
    %v806 = vpop.f32.mrf.mxu0
    %v807 = vadd.f32 %v758, %v806
    %808 = vmatmul.f32.gmra.mxu0 %v787
    %v809 = vpop.f32.mrf.mxu0
    %v810 = vadd.f32 %v758, %v809
    %811 = vdwg.mxu0
    %v814 = vrot.slane %v807, 2
    %v815 = vrot.slane %v807, 4
    %v816 = vrot.slane %v807, 6
    %v817 = vrot.slane %v810, 2
    %v818 = vrot.slane %v810, 4
    %v819 = vrot.slane %v810, 6
    %826 = vst [vmem:[#allocation3] sm:$0x3] %v807
    %827 = vst [vmem:[#allocation3 + $0x2] sm:$0x3] %v814
    %828 = vst [vmem:[#allocation3 + $0x4] sm:$0x3] %v815
    %829 = vst [vmem:[#allocation3 + $0x6] sm:$0x3] %v816
    %830 = vst [vmem:[#allocation3 + $0x8] sm:$0x3] %v810
    %831 = vst [vmem:[#allocation3 + $0xa] sm:$0x3] %v817
    %832 = vst [vmem:[#allocation3 + $0xc] sm:$0x3] %v818
    %833 = vst [vmem:[#allocation3 + $0xe] sm:$0x3] %v819
    %v834 = vld [vmem:[#allocation12] sm:$0xff]
    %v835 = vld [vmem:[#allocation12 + $0x8] sm:$0xff]
    %v836 = vld [vmem:[#allocation12 + $0x10] sm:$0xff]
    %v837 = vld [vmem:[#allocation12 + $0x18] sm:$0xff]
    %v838 = vld [vmem:[#allocation3] sm:$0x3]
    %839 = vmatpush.msra.mxu0 0.0
    %840 = vmatpush.msra.mxu0 0.0
    %841 = vmatpush.msra.mxu0 0.0
    %842 = vmatpush.msra.mxu0 0.0
    %843 = vmatpush.msra.mxu0 0.0
    %844 = vmatpush.msra.mxu0 0.0
    %845 = vmatpush.msra.mxu0 0.0
    %846 = vmatpush.msra.mxu0 0.0
    %847 = vmatpush.msra.mxu0 0.0
    %848 = vmatpush.msra.mxu0 0.0
    %849 = vmatpush.msra.mxu0 0.0
    %850 = vmatpush.msra.mxu0 0.0
    %851 = vmatpush.msra.mxu0 %v837
    %852 = vmatpush.msra.mxu0 %v836
    %853 = vmatpush.msra.mxu0 %v835
    %854 = vmatpush.msra.mxu0 %v834
    %855 = vmatmul.f32.gmra.mxu0 %v202
    %v856 = vpop.f32.mrf.mxu0
    %v857 = vadd.f32 0.0, %v856
    %858 = vdwg.mxu0
    %v859 = vadd.f32 %v838, %v857
    %v860 = vxor.u32 %v859, 2147483648
    %v861 = vmul.f32 %v860, 1.442695
    %v862 = vpow.pop %v861
    %v863 = vadd.f32 %v862, 1.0
    %v864 = vrcp.pop %v863
    %v865 = vmul.f32 %v863, %v864
    %v866 = vsub.f32 1.0, %v865
    %v867 = vmul.f32 %v864, %v866
    %v868 = vadd.f32 %v864, %v867
    %vm869 = vweird.f32 %v863
    %vm870 = vweird.f32 %v864
    %vm871 = vmor %vm869, %vm870
    %v872 = vsel %vm871, %v864, %v868
    %v873 = vand.u32 2147483647, %v863
    %vm874 = vcmp.eq.f32.partialorder %v873, 8.507059e+37
    %v875 = vand.u32 %v863, 2147483648
    %v876 = vor.u32 1.1754944e-38, %v875
    %v877 = vsel %vm874, %v876, %v872
    %v878 = vmul.f32 1.0, %v877
    %v879 = vtanh.pop %v859
    %v880 = vmul.f32 %v878, 0.0
    %882 = vrot.lane.b32.xlu0 %v879, 64
    %v883 = vpop.permute.xlu0 %882
    %v885 = vmul.f32 %v878, %v883
    %887 = vrot.lane.b32.xlu0 %v885, 32
    %v888 = vpop.permute.xlu0 %887
    %v890 = vadd.f32 %v880, %v888
    %v891 = vtanh.pop %v890
    %893 = vrot.lane.b32.xlu0 %v891, 64
    %v894 = vpop.permute.xlu0 %893
    %v896 = vmul.f32 %v878, %v894
    %898 = vrot.lane.b32.xlu0 %v896, 32
    %v899 = vpop.permute.xlu0 %898
    %901 = vst.msk [vmem:[#allocation13] sm:$0x3] %vm266, %v899
    %v902 = vld [vmem:[%s268] sm:$0x3]
    %v903 = vsel %vm146, %v899, 0
    %905 = vmatpush.msra.mxu0 0.0
    %906 = vmatpush.msra.mxu0 0.0
    %907 = vmatpush.msra.mxu0 0.0
    %908 = vmatpush.msra.mxu0 0.0
    %909 = vmatpush.msra.mxu0 0.0
    %910 = vmatpush.msra.mxu0 0.0
    %911 = vmatpush.msra.mxu0 0.0
    %912 = vmatpush.msra.mxu0 0.0
    %913 = vmatpush.msra.mxu0 0.0
    %914 = vmatpush.msra.mxu0 0.0
    %915 = vmatpush.msra.mxu0 0.0
    %916 = vmatpush.msra.mxu0 0.0
    %917 = vmatpush.msra.mxu0 %v837
    %918 = vmatpush.msra.mxu0 %v836
    %919 = vmatpush.msra.mxu0 %v835
    %920 = vmatpush.msra.mxu0 %v834
    %921 = vmatmul.f32.gmra.mxu0 %v903
    %v922 = vpop.f32.mrf.mxu0
    %v923 = vadd.f32 0.0, %v922
    %924 = vdwg.mxu0
    %v925 = vadd.f32 %v902, %v923
    %v926 = vxor.u32 %v925, 2147483648
    %v927 = vmul.f32 %v926, 1.442695
    %v928 = vpow.pop %v927
    %v929 = vadd.f32 %v928, 1.0
    %v930 = vrcp.pop %v929
    %v931 = vmul.f32 %v929, %v930
    %v932 = vsub.f32 1.0, %v931
    %v933 = vmul.f32 %v930, %v932
    %v934 = vadd.f32 %v930, %v933
    %vm935 = vweird.f32 %v929
    %vm936 = vweird.f32 %v930
    %vm937 = vmor %vm935, %vm936
    %v938 = vsel %vm937, %v930, %v934
    %v939 = vand.u32 2147483647, %v929
    %vm940 = vcmp.eq.f32.partialorder %v939, 8.507059e+37
    %v941 = vand.u32 %v929, 2147483648
    %v942 = vor.u32 1.1754944e-38, %v941
    %v943 = vsel %vm940, %v942, %v938
    %v944 = vmul.f32 1.0, %v943
    %v945 = vtanh.pop %v925
    %v946 = vmul.f32 %v944, %v890
    %948 = vrot.lane.b32.xlu0 %v945, 64
    %v949 = vpop.permute.xlu0 %948
    %v951 = vmul.f32 %v944, %v949
    %953 = vrot.lane.b32.xlu0 %v951, 32
    %v954 = vpop.permute.xlu0 %953
    %v956 = vadd.f32 %v946, %v954
    %v957 = vtanh.pop %v956
    %959 = vrot.lane.b32.xlu0 %v957, 64
    %v960 = vpop.permute.xlu0 %959
    %v962 = vmul.f32 %v944, %v960
    %964 = vrot.lane.b32.xlu0 %v962, 32
    %v965 = vpop.permute.xlu0 %964
    %s967 = scalar_lea.vmem [#allocation13], 2
    %968 = vst.msk [vmem:[%s967] sm:$0x3] %vm266, %v965
    %v969 = vld [vmem:[%s336] sm:$0x3]
    %v970 = vsel %vm146, %v965, 0
    %972 = vmatpush.msra.mxu0 0.0
    %973 = vmatpush.msra.mxu0 0.0
    %974 = vmatpush.msra.mxu0 0.0
    %975 = vmatpush.msra.mxu0 0.0
    %976 = vmatpush.msra.mxu0 0.0
    %977 = vmatpush.msra.mxu0 0.0
    %978 = vmatpush.msra.mxu0 0.0
    %979 = vmatpush.msra.mxu0 0.0
    %980 = vmatpush.msra.mxu0 0.0
    %981 = vmatpush.msra.mxu0 0.0
    %982 = vmatpush.msra.mxu0 0.0
    %983 = vmatpush.msra.mxu0 0.0
    %984 = vmatpush.msra.mxu0 %v837
    %985 = vmatpush.msra.mxu0 %v836
    %986 = vmatpush.msra.mxu0 %v835
    %987 = vmatpush.msra.mxu0 %v834
    %988 = vmatmul.f32.gmra.mxu0 %v970
    %v989 = vpop.f32.mrf.mxu0
    %v990 = vadd.f32 0.0, %v989
    %991 = vdwg.mxu0
    %v992 = vadd.f32 %v969, %v990
    %v993 = vxor.u32 %v992, 2147483648
    %v994 = vmul.f32 %v993, 1.442695
    %v995 = vpow.pop %v994
    %v996 = vadd.f32 %v995, 1.0
    %v997 = vrcp.pop %v996
    %v998 = vmul.f32 %v996, %v997
    %v999 = vsub.f32 1.0, %v998
    %v1000 = vmul.f32 %v997, %v999
    %v1001 = vadd.f32 %v997, %v1000
    %vm1002 = vweird.f32 %v996
    %vm1003 = vweird.f32 %v997
    %vm1004 = vmor %vm1002, %vm1003
    %v1005 = vsel %vm1004, %v997, %v1001
    %v1006 = vand.u32 2147483647, %v996
    %vm1007 = vcmp.eq.f32.partialorder %v1006, 8.507059e+37
    %v1008 = vand.u32 %v996, 2147483648
    %v1009 = vor.u32 1.1754944e-38, %v1008
    %v1010 = vsel %vm1007, %v1009, %v1005
    %v1011 = vmul.f32 1.0, %v1010
    %v1012 = vtanh.pop %v992
    %v1013 = vmul.f32 %v1011, %v956
    %1015 = vrot.lane.b32.xlu0 %v1012, 64
    %v1016 = vpop.permute.xlu0 %1015
    %v1018 = vmul.f32 %v1011, %v1016
    %1020 = vrot.lane.b32.xlu0 %v1018, 32
    %v1021 = vpop.permute.xlu0 %1020
    %v1023 = vadd.f32 %v1013, %v1021
    %v1024 = vtanh.pop %v1023
    %1026 = vrot.lane.b32.xlu0 %v1024, 64
    %v1027 = vpop.permute.xlu0 %1026
    %v1029 = vmul.f32 %v1011, %v1027
    %1031 = vrot.lane.b32.xlu0 %v1029, 32
    %v1032 = vpop.permute.xlu0 %1031
    %s1034 = scalar_lea.vmem [#allocation13], 4
    %1035 = vst.msk [vmem:[%s1034] sm:$0x3] %vm266, %v1032
    %v1036 = vld [vmem:[%s404] sm:$0x3]
    %v1037 = vsel %vm146, %v1032, 0
    %1039 = vmatpush.msra.mxu0 0.0
    %1040 = vmatpush.msra.mxu0 0.0
    %1041 = vmatpush.msra.mxu0 0.0
    %1042 = vmatpush.msra.mxu0 0.0
    %1043 = vmatpush.msra.mxu0 0.0
    %1044 = vmatpush.msra.mxu0 0.0
    %1045 = vmatpush.msra.mxu0 0.0
    %1046 = vmatpush.msra.mxu0 0.0
    %1047 = vmatpush.msra.mxu0 0.0
    %1048 = vmatpush.msra.mxu0 0.0
    %1049 = vmatpush.msra.mxu0 0.0
    %1050 = vmatpush.msra.mxu0 0.0
    %1051 = vmatpush.msra.mxu0 %v837
    %1052 = vmatpush.msra.mxu0 %v836
    %1053 = vmatpush.msra.mxu0 %v835
    %1054 = vmatpush.msra.mxu0 %v834
    %1055 = vmatmul.f32.gmra.mxu0 %v1037
    %v1056 = vpop.f32.mrf.mxu0
    %v1057 = vadd.f32 0.0, %v1056
    %1058 = vdwg.mxu0
    %v1059 = vadd.f32 %v1036, %v1057
    %v1060 = vxor.u32 %v1059, 2147483648
    %v1061 = vmul.f32 %v1060, 1.442695
    %v1062 = vpow.pop %v1061
    %v1063 = vadd.f32 %v1062, 1.0
    %v1064 = vrcp.pop %v1063
    %v1065 = vmul.f32 %v1063, %v1064
    %v1066 = vsub.f32 1.0, %v1065
    %v1067 = vmul.f32 %v1064, %v1066
    %v1068 = vadd.f32 %v1064, %v1067
    %vm1069 = vweird.f32 %v1063
    %vm1070 = vweird.f32 %v1064
    %vm1071 = vmor %vm1069, %vm1070
    %v1072 = vsel %vm1071, %v1064, %v1068
    %v1073 = vand.u32 2147483647, %v1063
    %vm1074 = vcmp.eq.f32.partialorder %v1073, 8.507059e+37
    %v1075 = vand.u32 %v1063, 2147483648
    %v1076 = vor.u32 1.1754944e-38, %v1075
    %v1077 = vsel %vm1074, %v1076, %v1072
    %v1078 = vmul.f32 1.0, %v1077
    %v1079 = vtanh.pop %v1059
    %v1080 = vmul.f32 %v1078, %v1023
    %1082 = vrot.lane.b32.xlu0 %v1079, 64
    %v1083 = vpop.permute.xlu0 %1082
    %v1085 = vmul.f32 %v1078, %v1083
    %1087 = vrot.lane.b32.xlu0 %v1085, 32
    %v1088 = vpop.permute.xlu0 %1087
    %v1090 = vadd.f32 %v1080, %v1088
    %v1091 = vtanh.pop %v1090
    %1093 = vrot.lane.b32.xlu0 %v1091, 64
    %v1094 = vpop.permute.xlu0 %1093
    %v1096 = vmul.f32 %v1078, %v1094
    %1098 = vrot.lane.b32.xlu0 %v1096, 32
    %v1099 = vpop.permute.xlu0 %1098
    %s1101 = scalar_lea.vmem [#allocation13], 6
    %1102 = vst.msk [vmem:[%s1101] sm:$0x3] %vm266, %v1099
    %v1103 = vld [vmem:[%s472] sm:$0x3]
    %v1104 = vsel %vm146, %v1099, 0
    %1106 = vmatpush.msra.mxu0 0.0
    %1107 = vmatpush.msra.mxu0 0.0
    %1108 = vmatpush.msra.mxu0 0.0
    %1109 = vmatpush.msra.mxu0 0.0
    %1110 = vmatpush.msra.mxu0 0.0
    %1111 = vmatpush.msra.mxu0 0.0
    %1112 = vmatpush.msra.mxu0 0.0
    %1113 = vmatpush.msra.mxu0 0.0
    %1114 = vmatpush.msra.mxu0 0.0
    %1115 = vmatpush.msra.mxu0 0.0
    %1116 = vmatpush.msra.mxu0 0.0
    %1117 = vmatpush.msra.mxu0 0.0
    %1118 = vmatpush.msra.mxu0 %v837
    %1119 = vmatpush.msra.mxu0 %v836
    %1120 = vmatpush.msra.mxu0 %v835
    %1121 = vmatpush.msra.mxu0 %v834
    %1122 = vmatmul.f32.gmra.mxu0 %v1104
    %v1123 = vpop.f32.mrf.mxu0
    %v1124 = vadd.f32 0.0, %v1123
    %1125 = vdwg.mxu0
    %v1126 = vadd.f32 %v1103, %v1124
    %v1127 = vxor.u32 %v1126, 2147483648
    %v1128 = vmul.f32 %v1127, 1.442695
    %v1129 = vpow.pop %v1128
    %v1130 = vadd.f32 %v1129, 1.0
    %v1131 = vrcp.pop %v1130
    %v1132 = vmul.f32 %v1130, %v1131
    %v1133 = vsub.f32 1.0, %v1132
    %v1134 = vmul.f32 %v1131, %v1133
    %v1135 = vadd.f32 %v1131, %v1134
    %vm1136 = vweird.f32 %v1130
    %vm1137 = vweird.f32 %v1131
    %vm1138 = vmor %vm1136, %vm1137
    %v1139 = vsel %vm1138, %v1131, %v1135
    %v1140 = vand.u32 2147483647, %v1130
    %vm1141 = vcmp.eq.f32.partialorder %v1140, 8.507059e+37
    %v1142 = vand.u32 %v1130, 2147483648
    %v1143 = vor.u32 1.1754944e-38, %v1142
    %v1144 = vsel %vm1141, %v1143, %v1139
    %v1145 = vmul.f32 1.0, %v1144
    %v1146 = vtanh.pop %v1126
    %v1147 = vmul.f32 %v1145, %v1090
    %1149 = vrot.lane.b32.xlu0 %v1146, 64
    %v1150 = vpop.permute.xlu0 %1149
    %v1152 = vmul.f32 %v1145, %v1150
    %1154 = vrot.lane.b32.xlu0 %v1152, 32
    %v1155 = vpop.permute.xlu0 %1154
    %v1157 = vadd.f32 %v1147, %v1155
    %v1158 = vtanh.pop %v1157
    %1160 = vrot.lane.b32.xlu0 %v1158, 64
    %v1161 = vpop.permute.xlu0 %1160
    %v1163 = vmul.f32 %v1145, %v1161
    %1165 = vrot.lane.b32.xlu0 %v1163, 32
    %v1166 = vpop.permute.xlu0 %1165
    %s1168 = scalar_lea.vmem [#allocation13], 8
    %1169 = vst.msk [vmem:[%s1168] sm:$0x3] %vm266, %v1166
    %v1170 = vld [vmem:[%s540] sm:$0x3]
    %v1171 = vsel %vm146, %v1166, 0
    %1173 = vmatpush.msra.mxu0 0.0
    %1174 = vmatpush.msra.mxu0 0.0
    %1175 = vmatpush.msra.mxu0 0.0
    %1176 = vmatpush.msra.mxu0 0.0
    %1177 = vmatpush.msra.mxu0 0.0
    %1178 = vmatpush.msra.mxu0 0.0
    %1179 = vmatpush.msra.mxu0 0.0
    %1180 = vmatpush.msra.mxu0 0.0
    %1181 = vmatpush.msra.mxu0 0.0
    %1182 = vmatpush.msra.mxu0 0.0
    %1183 = vmatpush.msra.mxu0 0.0
    %1184 = vmatpush.msra.mxu0 0.0
    %1185 = vmatpush.msra.mxu0 %v837
    %1186 = vmatpush.msra.mxu0 %v836
    %1187 = vmatpush.msra.mxu0 %v835
    %1188 = vmatpush.msra.mxu0 %v834
    %1189 = vmatmul.f32.gmra.mxu0 %v1171
    %v1190 = vpop.f32.mrf.mxu0
    %v1191 = vadd.f32 0.0, %v1190
    %1192 = vdwg.mxu0
    %v1193 = vadd.f32 %v1170, %v1191
    %v1194 = vxor.u32 %v1193, 2147483648
    %v1195 = vmul.f32 %v1194, 1.442695
    %v1196 = vpow.pop %v1195
    %v1197 = vadd.f32 %v1196, 1.0
    %v1198 = vrcp.pop %v1197
    %v1199 = vmul.f32 %v1197, %v1198
    %v1200 = vsub.f32 1.0, %v1199
    %v1201 = vmul.f32 %v1198, %v1200
    %v1202 = vadd.f32 %v1198, %v1201
    %vm1203 = vweird.f32 %v1197
    %vm1204 = vweird.f32 %v1198
    %vm1205 = vmor %vm1203, %vm1204
    %v1206 = vsel %vm1205, %v1198, %v1202
    %v1207 = vand.u32 2147483647, %v1197
    %vm1208 = vcmp.eq.f32.partialorder %v1207, 8.507059e+37
    %v1209 = vand.u32 %v1197, 2147483648
    %v1210 = vor.u32 1.1754944e-38, %v1209
    %v1211 = vsel %vm1208, %v1210, %v1206
    %v1212 = vmul.f32 1.0, %v1211
    %v1213 = vtanh.pop %v1193
    %v1214 = vmul.f32 %v1212, %v1157
    %1216 = vrot.lane.b32.xlu0 %v1213, 64
    %v1217 = vpop.permute.xlu0 %1216
    %v1219 = vmul.f32 %v1212, %v1217
    %1221 = vrot.lane.b32.xlu0 %v1219, 32
    %v1222 = vpop.permute.xlu0 %1221
    %v1224 = vadd.f32 %v1214, %v1222
    %v1225 = vtanh.pop %v1224
    %1227 = vrot.lane.b32.xlu0 %v1225, 64
    %v1228 = vpop.permute.xlu0 %1227
    %v1230 = vmul.f32 %v1212, %v1228
    %1232 = vrot.lane.b32.xlu0 %v1230, 32
    %v1233 = vpop.permute.xlu0 %1232
    %s1235 = scalar_lea.vmem [#allocation13], 10
    %1236 = vst.msk [vmem:[%s1235] sm:$0x3] %vm266, %v1233
    %v1237 = vld [vmem:[%s608] sm:$0x3]
    %v1238 = vsel %vm146, %v1233, 0
    %1240 = vmatpush.msra.mxu0 0.0
    %1241 = vmatpush.msra.mxu0 0.0
    %1242 = vmatpush.msra.mxu0 0.0
    %1243 = vmatpush.msra.mxu0 0.0
    %1244 = vmatpush.msra.mxu0 0.0
    %1245 = vmatpush.msra.mxu0 0.0
    %1246 = vmatpush.msra.mxu0 0.0
    %1247 = vmatpush.msra.mxu0 0.0
    %1248 = vmatpush.msra.mxu0 0.0
    %1249 = vmatpush.msra.mxu0 0.0
    %1250 = vmatpush.msra.mxu0 0.0
    %1251 = vmatpush.msra.mxu0 0.0
    %1252 = vmatpush.msra.mxu0 %v837
    %1253 = vmatpush.msra.mxu0 %v836
    %1254 = vmatpush.msra.mxu0 %v835
    %1255 = vmatpush.msra.mxu0 %v834
    %1256 = vmatmul.f32.gmra.mxu0 %v1238
    %v1257 = vpop.f32.mrf.mxu0
    %v1258 = vadd.f32 0.0, %v1257
    %1259 = vdwg.mxu0
    %v1260 = vadd.f32 %v1237, %v1258
    %v1261 = vxor.u32 %v1260, 2147483648
    %v1262 = vmul.f32 %v1261, 1.442695
    %v1263 = vpow.pop %v1262
    %v1264 = vadd.f32 %v1263, 1.0
    %v1265 = vrcp.pop %v1264
    %v1266 = vmul.f32 %v1264, %v1265
    %v1267 = vsub.f32 1.0, %v1266
    %v1268 = vmul.f32 %v1265, %v1267
    %v1269 = vadd.f32 %v1265, %v1268
    %vm1270 = vweird.f32 %v1264
    %vm1271 = vweird.f32 %v1265
    %vm1272 = vmor %vm1270, %vm1271
    %v1273 = vsel %vm1272, %v1265, %v1269
    %v1274 = vand.u32 2147483647, %v1264
    %vm1275 = vcmp.eq.f32.partialorder %v1274, 8.507059e+37
    %v1276 = vand.u32 %v1264, 2147483648
    %v1277 = vor.u32 1.1754944e-38, %v1276
    %v1278 = vsel %vm1275, %v1277, %v1273
    %v1279 = vmul.f32 1.0, %v1278
    %v1280 = vtanh.pop %v1260
    %v1281 = vmul.f32 %v1279, %v1224
    %1283 = vrot.lane.b32.xlu0 %v1280, 64
    %v1284 = vpop.permute.xlu0 %1283
    %v1286 = vmul.f32 %v1279, %v1284
    %1288 = vrot.lane.b32.xlu0 %v1286, 32
    %v1289 = vpop.permute.xlu0 %1288
    %v1291 = vadd.f32 %v1281, %v1289
    %v1292 = vtanh.pop %v1291
    %1294 = vrot.lane.b32.xlu0 %v1292, 64
    %v1295 = vpop.permute.xlu0 %1294
    %v1297 = vmul.f32 %v1279, %v1295
    %1299 = vrot.lane.b32.xlu0 %v1297, 32
    %v1300 = vpop.permute.xlu0 %1299
    %s1302 = scalar_lea.vmem [#allocation13], 12
    %1303 = vst.msk [vmem:[%s1302] sm:$0x3] %vm266, %v1300
    %v1304 = vld [vmem:[%s676] sm:$0x3]
    %v1305 = vsel %vm146, %v1300, 0
    %1307 = vmatpush.msra.mxu0 0.0
    %1308 = vmatpush.msra.mxu0 0.0
    %1309 = vmatpush.msra.mxu0 0.0
    %1310 = vmatpush.msra.mxu0 0.0
    %1311 = vmatpush.msra.mxu0 0.0
    %1312 = vmatpush.msra.mxu0 0.0
    %1313 = vmatpush.msra.mxu0 0.0
    %1314 = vmatpush.msra.mxu0 0.0
    %1315 = vmatpush.msra.mxu0 0.0
    %1316 = vmatpush.msra.mxu0 0.0
    %1317 = vmatpush.msra.mxu0 0.0
    %1318 = vmatpush.msra.mxu0 0.0
    %1319 = vmatpush.msra.mxu0 %v837
    %1320 = vmatpush.msra.mxu0 %v836
    %1321 = vmatpush.msra.mxu0 %v835
    %1322 = vmatpush.msra.mxu0 %v834
    %1323 = vmatmul.f32.gmra.mxu0 %v1305
    %v1324 = vpop.f32.mrf.mxu0
    %v1325 = vadd.f32 0.0, %v1324
    %1326 = vdwg.mxu0
    %v1327 = vadd.f32 %v1304, %v1325
    %v1328 = vxor.u32 %v1327, 2147483648
    %v1329 = vmul.f32 %v1328, 1.442695
    %v1330 = vpow.pop %v1329
    %v1331 = vadd.f32 %v1330, 1.0
    %v1332 = vrcp.pop %v1331
    %v1333 = vmul.f32 %v1331, %v1332
    %v1334 = vsub.f32 1.0, %v1333
    %v1335 = vmul.f32 %v1332, %v1334
    %v1336 = vadd.f32 %v1332, %v1335
    %vm1337 = vweird.f32 %v1331
    %vm1338 = vweird.f32 %v1332
    %vm1339 = vmor %vm1337, %vm1338
    %v1340 = vsel %vm1339, %v1332, %v1336
    %v1341 = vand.u32 2147483647, %v1331
    %vm1342 = vcmp.eq.f32.partialorder %v1341, 8.507059e+37
    %v1343 = vand.u32 %v1331, 2147483648
    %v1344 = vor.u32 1.1754944e-38, %v1343
    %v1345 = vsel %vm1342, %v1344, %v1340
    %v1346 = vmul.f32 1.0, %v1345
    %v1347 = vtanh.pop %v1327
    %v1348 = vmul.f32 %v1346, %v1291
    %1350 = vrot.lane.b32.xlu0 %v1347, 64
    %v1351 = vpop.permute.xlu0 %1350
    %v1353 = vmul.f32 %v1346, %v1351
    %1355 = vrot.lane.b32.xlu0 %v1353, 32
    %v1356 = vpop.permute.xlu0 %1355
    %v1358 = vadd.f32 %v1348, %v1356
    %v1359 = vtanh.pop %v1358
    %1361 = vrot.lane.b32.xlu0 %v1359, 64
    %v1362 = vpop.permute.xlu0 %1361
    %v1364 = vmul.f32 %v1346, %v1362
    %1366 = vrot.lane.b32.xlu0 %v1364, 32
    %v1367 = vpop.permute.xlu0 %1366
    %s1369 = scalar_lea.vmem [#allocation13], 14
    %1370 = vst.msk [vmem:[%s1369] sm:$0x3] %vm266, %v1367
    // Predicated region
    $region50: #{tpu_custom_call.1} parent=1 // pred_check
      _
    $region51: #{tpu_custom_call.1} parent=1 // pred_check_branch
      %1372 = sbr.rel (0) target = $region53
    $region52: #{tpu_custom_call.1} parent=1 // pred_region
      %1374 = vsyncadd [#allocation6], 0
      %s1375 = sshll.u32 [#allocation13], 4
      %s1376 = int_to_ptr.vmem [resolvable:$true] %s1375
      %s1377 = sshll.u32 %s7, 4
      %s1378 = int_to_ptr.hbm [resolvable:$true] %s1377
      %1383 = dma.vmem_to_hbm [thread:$0]  %s1376, 256, %s1378, [#allocation6], 32, 32, 2
    $region53: #{tpu_custom_call.1} parent=1 // pred_fallthru
      _
    // Predicated region
    $region54: #{tpu_custom_call.1} parent=1 // pred_check
      _
    $region55: #{tpu_custom_call.1} parent=1 // pred_check_branch
      %1385 = sbr.rel (0) target = $region57
    $region56: #{tpu_custom_call.1} parent=1 // pred_region
      %1387 = dma.done [#allocation6], 256
    $region57: #{tpu_custom_call.1} parent=1 // pred_fallthru
      _
    %1388 = vsyncpa [#allocation5], 1
    %1389 = vsyncpa [#allocation8], 1
    %1390 = vsyncpa [#allocation11], 1
    %1391 = vsyncpa [#allocation6], 1

</llo_original>
